<compile_context>
chip_gen: v5e
topology: v5e:2x2
jax: 0.10.0
libtpu: 0.0.40
codegen_flags: <defaults>
</compile_context>

<pallas_src>
import jax
import jax.numpy as jnp
import numpy as np
from jax.experimental import pallas as pl
from jax.experimental.pallas import tpu as pltpu

EPS = 1e-5                       # nn.InstanceNorm1d default eps
DILATIONS = (1, 2, 4, 1)         # 2 ** (idx % 3) for idx in range(4)
_OFFSETS = tuple(sorted({s * d for d in set((1,) + DILATIONS) for s in (-1, 1)}))


def _local_features_kernel(x_ref, w0_ref, b0_ref, wb_ref, bb_ref, o_ref):
    """One grid step == B batch elements, flattened to rows = B * L.

    x_ref : (B, L, Cin)   f32 input (channels last)
    w0_ref: (3*Cin, C)    bf16 preprocess weights (taps stacked along rows)
    b0_ref: (1, C)        f32 preprocess bias
    wb_ref: (4, 3*C, C)   bf16 residual-block weights (taps stacked along rows)
    bb_ref: (4, 1, C)     f32 residual-block biases
    o_ref : (B, L, C)     f32 output
    """
    B, L, Cin = x_ref.shape
    C = o_ref.shape[-1]
    M = B * L

    # Hoisted boundary masks: row r (= b*L + l) keeps tap `off` iff 0 <= l+off < L.
    # This reproduces zero padding AND stops taps from crossing batch boundaries.
    pos = jax.lax.broadcasted_iota(jnp.int32, (B, L, 1), 1)
    keep = {
        off: jnp.logical_and(pos + off >= 0, pos + off < L)
                .astype(jnp.float32).reshape(M, 1)
        for off in _OFFSETS
    }

    def shifted(v, off):
        # result[r] = v[r + off] within the same sequence, else 0 (zero padding).
        return pltpu.roll(v, shift=(-off) % M, axis=0) * keep[off]

    def conv3(v, w_packed, bias, dil):
        # Dilated kernel-3 conv as a single MXU matmul over tap-stacked channels.
        stacked = jnp.concatenate([shifted(v, -dil), v, shifted(v, dil)], axis=-1)
        return jnp.dot(stacked.astype(jnp.bfloat16), w_packed,
                       preferred_element_type=jnp.float32) + bias

    def elu(v):
        # F.elu with alpha=1; exp argument clamped so the untaken branch is safe.
        return jnp.where(v > 0, v, jnp.exp(jnp.minimum(v, 0.0)) - 1.0)

    x = x_ref[...].reshape(M, Cin)
    out = elu(conv3(x, w0_ref[...], b0_ref[...], 1))           # (M, C) f32

    inv_l = jnp.float32(1.0 / L)
    for i in range(4):
        # InstanceNorm1d (no affine): per (batch element, channel) stats over L,
        # computed in a single pass (sum + sum of squares).
        o3 = out.reshape(B, L, C)
        mean = jnp.sum(o3, axis=1, keepdims=True) * inv_l
        ex2 = jnp.sum(o3 * o3, axis=1, keepdims=True) * inv_l
        rstd = jax.lax.rsqrt(jnp.maximum(ex2 - mean * mean, 0.0) + EPS)
        normed = ((o3 - mean) * rstd).reshape(M, C)
        out = elu(conv3(normed, wb_ref[i], bb_ref[i], DILATIONS[i])) + out

    o_ref[...] = out.reshape(B, L, C)


def _round_up(x, m):
    return ((x + m - 1) // m) * m


def _pick_batch_tile(n, l, target_rows=512):
    """Largest divisor of n with b*l <= target_rows, preferring >=2 grid steps (v7x: 2 TCs)."""
    divisors = [d for d in range(1, n + 1) if n % d == 0]
    fitting = [d for d in divisors if d * l <= max(target_rows, l)]
    b = max(fitting)
    if b > 1 and n // b < 2:
        two_step = [d for d in divisors if n // d >= 2]
        if two_step:
            b = max(two_step)
    return b


@jax.jit
def local_features(x_ncl, w0_oik, b0, wb_oik, bb):
    """PyTorch-convention I/O: x (N, Cin, L); Conv1d weights (out, in, 3); returns (N, C, L)."""
    N, Cin, L = x_ncl.shape
    C = w0_oik.shape[0]
    Cp = _round_up(C, 128)       # lane-dense channel axis (review: biggest store-side lever)

    x = jnp.transpose(x_ncl, (0, 2, 1)).astype(jnp.float32)                 # (N, L, Cin)

    # Pack weights taps-major so each conv is one (rows, 3*C) x (3*C, C) matmul;
    # zero-pad channels to Cp and cast matmul operands to bf16 (f32 accumulation).
    w0 = jnp.transpose(w0_oik, (2, 1, 0))                                   # (3, Cin, C)
    w0 = jnp.pad(w0, ((0, 0), (0, 0), (0, Cp - C)))
    w0 = w0.reshape(3 * Cin, Cp).astype(jnp.bfloat16)
    b0p = jnp.pad(b0, (0, Cp - C)).reshape(1, Cp).astype(jnp.float32)

    wb = jnp.transpose(wb_oik, (0, 3, 2, 1))                                # (4, 3, C, C)
    wb = jnp.pad(wb, ((0, 0), (0, 0), (0, Cp - C), (0, Cp - C)))
    wb = wb.reshape(4, 3 * Cp, Cp).astype(jnp.bfloat16)
    bbp = jnp.pad(bb, ((0, 0), (0, Cp - C))).reshape(4, 1, Cp).astype(jnp.float32)

    b_tile = _pick_batch_tile(N, L)
    grid = (N // b_tile,)

    out = pl.pallas_call(
        _local_features_kernel,
        out_shape=jax.ShapeDtypeStruct((N, L, Cp), jnp.float32),
        grid_spec=pltpu.PrefetchScalarGridSpec(
            num_scalar_prefetch=0,
            grid=grid,
            in_specs=[
                pl.BlockSpec((b_tile, L, Cin), lambda n: (n, 0, 0)),
                pl.BlockSpec((3 * Cin, Cp), lambda n: (0, 0)),
                pl.BlockSpec((1, Cp), lambda n: (0, 0)),
                pl.BlockSpec((4, 3 * Cp, Cp), lambda n: (0, 0, 0)),
                pl.BlockSpec((4, 1, Cp), lambda n: (0, 0, 0)),
            ],
            out_specs=pl.BlockSpec((b_tile, L, Cp), lambda n: (n, 0, 0)),
        ),
        compiler_params=pltpu.CompilerParams(
            dimension_semantics=("parallel",),
            # Explicit VMEM budget with headroom for v7x (64 MiB physical).
            # For very long sequences, tile L inside the kernel instead.
            vmem_limit_bytes=48 * 1024 * 1024,
        ),
    )(x, w0, b0p, wb, bbp)

    # Drop channel padding; back to the module's NCL layout.
    return jnp.transpose(out[:, :, :C], (0, 2, 1))


# ----------------------------- pure-JAX reference ---------------------------
def _conv1d_ncl(x, w, b, dilation, padding):
    # Mirrors the kernel's reviewed MXU precision choice: bf16 operands, f32 accumulation.
    y = jax.lax.conv_general_dilated(
        x.astype(jnp.bfloat16), w.astype(jnp.bfloat16),
        window_strides=(1,), padding=[(padding, padding)],
        rhs_dilation=(dilation,),
        dimension_numbers=("NCH", "OIH", "NCH"),
        preferred_element_type=jnp.float32,
    )
    return y + b[None, :, None]


def local_features_ref(x_ncl, w0_oik, b0, wb_oik, bb):
    out = jax.nn.elu(_conv1d_ncl(x_ncl, w0_oik, b0, 1, 1))
    for i in range(4):
        d = DILATIONS[i]
        mean = jnp.mean(out, axis=-1, keepdims=True)
        var = jnp.mean((out - mean) ** 2, axis=-1, keepdims=True)
        normed = (out - mean) / jnp.sqrt(var + EPS)
        out = jax.nn.elu(_conv1d_ncl(normed, wb_oik[i], bb[i], d, d)) + out
    return out


if __name__ == "__main__":
    N, L, IN_SIZE, SIZE = 2, 16, 8, 32

    key = jax.random.PRNGKey(0)
    k = jax.random.split(key, 5)

    # PyTorch-convention tensors: input NCL, Conv1d weight (out, in, kernel).
    x_ncl = jax.random.normal(k[0], (N, IN_SIZE, L), jnp.float32)
    w0 = 0.2 * jax.random.normal(k[1], (SIZE, IN_SIZE, 3), jnp.float32)
    b0 = 0.1 * jax.random.normal(k[2], (SIZE,), jnp.float32)
    wb = 0.2 * jax.random.normal(k[3], (4, SIZE, SIZE, 3), jnp.float32)
    bb = 0.1 * jax.random.normal(k[4], (4, SIZE), jnp.float32)

    out = jax.block_until_ready(local_features(x_ncl, w0, b0, wb, bb))
    ref = jax.block_until_ready(local_features_ref(x_ncl, w0, b0, wb, bb))

    np.testing.assert_allclose(np.asarray(out), np.asarray(ref), rtol=1e-2, atol=1e-2)
    print("KERNEL_OK")
</pallas_src>

<mosaic_0001>
module attributes {stable_mosaic.version = 11 : i64} {
  func.func @_local_features_kernel(%arg0: i32, %arg1: memref<1x16x8xf32, #tpu.memory_space<vmem>>, %arg2: memref<24x128xbf16, #tpu.memory_space<vmem>>, %arg3: memref<1x128xf32, #tpu.memory_space<vmem>>, %arg4: memref<4x384x128xbf16, #tpu.memory_space<vmem>>, %arg5: memref<4x1x128xf32, #tpu.memory_space<vmem>>, %arg6: memref<1x16x128xf32, #tpu.memory_space<vmem>>) attributes {dimension_semantics = [#tpu.dimension_semantics<parallel>], iteration_bounds = array<i64: 2>, scalar_prefetch = 0 : i64, scratch_operands = 0 : i64, tpu.core_type = #tpu.core_type<tc>, window_params = [{transform_indices = @transform_0, window_bounds = array<i64: 1, 16, 8>}, {pipeline_mode = #tpu.pipeline_mode<synchronous>, transform_indices = @transform_1, window_bounds = array<i64: 24, 128>}, {pipeline_mode = #tpu.pipeline_mode<synchronous>, transform_indices = @transform_2, window_bounds = array<i64: 1, 128>}, {pipeline_mode = #tpu.pipeline_mode<synchronous>, transform_indices = @transform_3, window_bounds = array<i64: 4, 384, 128>}, {pipeline_mode = #tpu.pipeline_mode<synchronous>, transform_indices = @transform_4, window_bounds = array<i64: 4, 1, 128>}, {transform_indices = @transform_5, window_bounds = array<i64: 1, 16, 128>}]} {
    %0 = tpu.iota {dimensions = array<i32: 1>} : vector<1x16x1xi32>
    %c-4_i32 = arith.constant -4 : i32
    %1 = vector.broadcast %c-4_i32 : i32 to vector<1x16x1xi32>
    %2 = arith.addi %0, %1 : vector<1x16x1xi32>
    %c0_i32 = arith.constant 0 : i32
    %3 = vector.broadcast %c0_i32 : i32 to vector<1x16x1xi32>
    %4 = arith.cmpi sge, %2, %3 : vector<1x16x1xi32>
    %c-4_i32_0 = arith.constant -4 : i32
    %5 = vector.broadcast %c-4_i32_0 : i32 to vector<1x16x1xi32>
    %6 = arith.addi %0, %5 : vector<1x16x1xi32>
    %c16_i32 = arith.constant 16 : i32
    %7 = vector.broadcast %c16_i32 : i32 to vector<1x16x1xi32>
    %8 = arith.cmpi slt, %6, %7 : vector<1x16x1xi32>
    %9 = arith.andi %4, %8 : vector<1x16x1xi1>
    %10 = arith.extui %9 : vector<1x16x1xi1> to vector<1x16x1xi32>
    %11 = arith.sitofp %10 : vector<1x16x1xi32> to vector<1x16x1xf32>
    %12 = vector.shape_cast %11 : vector<1x16x1xf32> to vector<16x1xf32>
    %c-2_i32 = arith.constant -2 : i32
    %13 = vector.broadcast %c-2_i32 : i32 to vector<1x16x1xi32>
    %14 = arith.addi %0, %13 : vector<1x16x1xi32>
    %c0_i32_1 = arith.constant 0 : i32
    %15 = vector.broadcast %c0_i32_1 : i32 to vector<1x16x1xi32>
    %16 = arith.cmpi sge, %14, %15 : vector<1x16x1xi32>
    %c-2_i32_2 = arith.constant -2 : i32
    %17 = vector.broadcast %c-2_i32_2 : i32 to vector<1x16x1xi32>
    %18 = arith.addi %0, %17 : vector<1x16x1xi32>
    %c16_i32_3 = arith.constant 16 : i32
    %19 = vector.broadcast %c16_i32_3 : i32 to vector<1x16x1xi32>
    %20 = arith.cmpi slt, %18, %19 : vector<1x16x1xi32>
    %21 = arith.andi %16, %20 : vector<1x16x1xi1>
    %22 = arith.extui %21 : vector<1x16x1xi1> to vector<1x16x1xi32>
    %23 = arith.sitofp %22 : vector<1x16x1xi32> to vector<1x16x1xf32>
    %24 = vector.shape_cast %23 : vector<1x16x1xf32> to vector<16x1xf32>
    %c-1_i32 = arith.constant -1 : i32
    %25 = vector.broadcast %c-1_i32 : i32 to vector<1x16x1xi32>
    %26 = arith.addi %0, %25 : vector<1x16x1xi32>
    %c0_i32_4 = arith.constant 0 : i32
    %27 = vector.broadcast %c0_i32_4 : i32 to vector<1x16x1xi32>
    %28 = arith.cmpi sge, %26, %27 : vector<1x16x1xi32>
    %c-1_i32_5 = arith.constant -1 : i32
    %29 = vector.broadcast %c-1_i32_5 : i32 to vector<1x16x1xi32>
    %30 = arith.addi %0, %29 : vector<1x16x1xi32>
    %c16_i32_6 = arith.constant 16 : i32
    %31 = vector.broadcast %c16_i32_6 : i32 to vector<1x16x1xi32>
    %32 = arith.cmpi slt, %30, %31 : vector<1x16x1xi32>
    %33 = arith.andi %28, %32 : vector<1x16x1xi1>
    %34 = arith.extui %33 : vector<1x16x1xi1> to vector<1x16x1xi32>
    %35 = arith.sitofp %34 : vector<1x16x1xi32> to vector<1x16x1xf32>
    %36 = vector.shape_cast %35 : vector<1x16x1xf32> to vector<16x1xf32>
    %c1_i32 = arith.constant 1 : i32
    %37 = vector.broadcast %c1_i32 : i32 to vector<1x16x1xi32>
    %38 = arith.addi %0, %37 : vector<1x16x1xi32>
    %c0_i32_7 = arith.constant 0 : i32
    %39 = vector.broadcast %c0_i32_7 : i32 to vector<1x16x1xi32>
    %40 = arith.cmpi sge, %38, %39 : vector<1x16x1xi32>
    %c1_i32_8 = arith.constant 1 : i32
    %41 = vector.broadcast %c1_i32_8 : i32 to vector<1x16x1xi32>
    %42 = arith.addi %0, %41 : vector<1x16x1xi32>
    %c16_i32_9 = arith.constant 16 : i32
    %43 = vector.broadcast %c16_i32_9 : i32 to vector<1x16x1xi32>
    %44 = arith.cmpi slt, %42, %43 : vector<1x16x1xi32>
    %45 = arith.andi %40, %44 : vector<1x16x1xi1>
    %46 = arith.extui %45 : vector<1x16x1xi1> to vector<1x16x1xi32>
    %47 = arith.sitofp %46 : vector<1x16x1xi32> to vector<1x16x1xf32>
    %48 = vector.shape_cast %47 : vector<1x16x1xf32> to vector<16x1xf32>
    %c2_i32 = arith.constant 2 : i32
    %49 = vector.broadcast %c2_i32 : i32 to vector<1x16x1xi32>
    %50 = arith.addi %0, %49 : vector<1x16x1xi32>
    %c0_i32_10 = arith.constant 0 : i32
    %51 = vector.broadcast %c0_i32_10 : i32 to vector<1x16x1xi32>
    %52 = arith.cmpi sge, %50, %51 : vector<1x16x1xi32>
    %c2_i32_11 = arith.constant 2 : i32
    %53 = vector.broadcast %c2_i32_11 : i32 to vector<1x16x1xi32>
    %54 = arith.addi %0, %53 : vector<1x16x1xi32>
    %c16_i32_12 = arith.constant 16 : i32
    %55 = vector.broadcast %c16_i32_12 : i32 to vector<1x16x1xi32>
    %56 = arith.cmpi slt, %54, %55 : vector<1x16x1xi32>
    %57 = arith.andi %52, %56 : vector<1x16x1xi1>
    %58 = arith.extui %57 : vector<1x16x1xi1> to vector<1x16x1xi32>
    %59 = arith.sitofp %58 : vector<1x16x1xi32> to vector<1x16x1xf32>
    %60 = vector.shape_cast %59 : vector<1x16x1xf32> to vector<16x1xf32>
    %c4_i32 = arith.constant 4 : i32
    %61 = vector.broadcast %c4_i32 : i32 to vector<1x16x1xi32>
    %62 = arith.addi %0, %61 : vector<1x16x1xi32>
    %c0_i32_13 = arith.constant 0 : i32
    %63 = vector.broadcast %c0_i32_13 : i32 to vector<1x16x1xi32>
    %64 = arith.cmpi sge, %62, %63 : vector<1x16x1xi32>
    %c4_i32_14 = arith.constant 4 : i32
    %65 = vector.broadcast %c4_i32_14 : i32 to vector<1x16x1xi32>
    %66 = arith.addi %0, %65 : vector<1x16x1xi32>
    %c16_i32_15 = arith.constant 16 : i32
    %67 = vector.broadcast %c16_i32_15 : i32 to vector<1x16x1xi32>
    %68 = arith.cmpi slt, %66, %67 : vector<1x16x1xi32>
    %69 = arith.andi %64, %68 : vector<1x16x1xi1>
    %70 = arith.extui %69 : vector<1x16x1xi1> to vector<1x16x1xi32>
    %71 = arith.sitofp %70 : vector<1x16x1xi32> to vector<1x16x1xf32>
    %72 = vector.shape_cast %71 : vector<1x16x1xf32> to vector<16x1xf32>
    %c0 = arith.constant 0 : index
    %c0_16 = arith.constant 0 : index
    %c0_17 = arith.constant 0 : index
    %73 = vector.load %arg1[%c0, %c0_16, %c0_17] : memref<1x16x8xf32, #tpu.memory_space<vmem>>, vector<1x16x8xf32>
    %74 = vector.shape_cast %73 : vector<1x16x8xf32> to vector<16x8xf32>
    %c0_18 = arith.constant 0 : index
    %c0_19 = arith.constant 0 : index
    %75 = vector.load %arg2[%c0_18, %c0_19] : memref<24x128xbf16, #tpu.memory_space<vmem>>, vector<24x128xbf16>
    %c0_20 = arith.constant 0 : index
    %c0_21 = arith.constant 0 : index
    %76 = vector.load %arg3[%c0_20, %c0_21] : memref<1x128xf32, #tpu.memory_space<vmem>>, vector<1x128xf32>
    %c1_i32_22 = arith.constant 1 : i32
    %77 = tpu.dynamic_rotate %74 by %c1_i32_22 dim 0 : vector<16x8xf32>, i32 -> vector<16x8xf32>
    %78 = vector.broadcast %36 : vector<16x1xf32> to vector<16x8xf32>
    %79 = arith.mulf %77, %78 : vector<16x8xf32>
    %c15_i32 = arith.constant 15 : i32
    %80 = tpu.dynamic_rotate %74 by %c15_i32 dim 0 : vector<16x8xf32>, i32 -> vector<16x8xf32>
    %81 = vector.broadcast %48 : vector<16x1xf32> to vector<16x8xf32>
    %82 = arith.mulf %80, %81 : vector<16x8xf32>
    %83 = tpu.concatenate %79, %74, %82 in 1 : vector<16x8xf32>, vector<16x8xf32>, vector<16x8xf32> -> vector<16x24xf32>
    %84 = arith.truncf %83 : vector<16x24xf32> to vector<16x24xbf16>
    %cst = arith.constant dense<0.000000e+00> : vector<16x128xf32>
    %85 = tpu.matmul %84, %75, %cst {dimension_numbers = #tpu.dot_dimension_numbers<[1], [0], [0], [1], [0, 0, 1, 1], [], []>} : vector<16x24xbf16>, vector<24x128xbf16>, vector<16x128xf32> -> vector<16x128xf32>
    %86 = vector.broadcast %76 : vector<1x128xf32> to vector<16x128xf32>
    %87 = arith.addf %85, %86 : vector<16x128xf32>
    %cst_23 = arith.constant 0.000000e+00 : f32
    %88 = vector.broadcast %cst_23 : f32 to vector<16x128xf32>
    %89 = arith.cmpf ogt, %87, %88 : vector<16x128xf32>
    %cst_24 = arith.constant 0.000000e+00 : f32
    %90 = vector.broadcast %cst_24 : f32 to vector<16x128xf32>
    %91 = arith.minimumf %87, %90 : vector<16x128xf32>
    %92 = math.exp %91 : vector<16x128xf32>
    %cst_25 = arith.constant 1.000000e+00 : f32
    %93 = vector.broadcast %cst_25 : f32 to vector<16x128xf32>
    %94 = arith.subf %92, %93 : vector<16x128xf32>
    %95 = arith.select %89, %87, %94 : vector<16x128xi1>, vector<16x128xf32>
    %96 = vector.shape_cast %95 : vector<16x128xf32> to vector<1x16x128xf32>
    %cst_26 = arith.constant dense<0.000000e+00> : vector<1x128xf32>
    %97 = vector.multi_reduction <add>, %96, %cst_26 [1] : vector<1x16x128xf32> to vector<1x128xf32>
    %98 = vector.shape_cast %97 : vector<1x128xf32> to vector<1x1x128xf32>
    %cst_27 = arith.constant 6.250000e-02 : f32
    %99 = vector.broadcast %cst_27 : f32 to vector<1x1x128xf32>
    %100 = arith.mulf %98, %99 : vector<1x1x128xf32>
    %101 = arith.mulf %96, %96 : vector<1x16x128xf32>
    %cst_28 = arith.constant dense<0.000000e+00> : vector<1x128xf32>
    %102 = vector.multi_reduction <add>, %101, %cst_28 [1] : vector<1x16x128xf32> to vector<1x128xf32>
    %103 = vector.shape_cast %102 : vector<1x128xf32> to vector<1x1x128xf32>
    %cst_29 = arith.constant 6.250000e-02 : f32
    %104 = vector.broadcast %cst_29 : f32 to vector<1x1x128xf32>
    %105 = arith.mulf %103, %104 : vector<1x1x128xf32>
    %106 = arith.mulf %100, %100 : vector<1x1x128xf32>
    %107 = arith.subf %105, %106 : vector<1x1x128xf32>
    %cst_30 = arith.constant 0.000000e+00 : f32
    %108 = vector.broadcast %cst_30 : f32 to vector<1x1x128xf32>
    %109 = arith.maximumf %107, %108 : vector<1x1x128xf32>
    %cst_31 = arith.constant 9.99999974E-6 : f32
    %110 = vector.broadcast %cst_31 : f32 to vector<1x1x128xf32>
    %111 = arith.addf %109, %110 : vector<1x1x128xf32>
    %112 = math.rsqrt %111 : vector<1x1x128xf32>
    %113 = vector.broadcast %100 : vector<1x1x128xf32> to vector<1x16x128xf32>
    %114 = arith.subf %96, %113 : vector<1x16x128xf32>
    %115 = vector.broadcast %112 : vector<1x1x128xf32> to vector<1x16x128xf32>
    %116 = arith.mulf %114, %115 : vector<1x16x128xf32>
    %117 = vector.shape_cast %116 : vector<1x16x128xf32> to vector<16x128xf32>
    %c0_32 = arith.constant 0 : index
    %c0_33 = arith.constant 0 : index
    %c0_34 = arith.constant 0 : index
    %118 = vector.load %arg4[%c0_32, %c0_33, %c0_34] : memref<4x384x128xbf16, #tpu.memory_space<vmem>>, vector<1x384x128xbf16>
    %119 = vector.shape_cast %118 : vector<1x384x128xbf16> to vector<384x128xbf16>
    %c0_35 = arith.constant 0 : index
    %c0_36 = arith.constant 0 : index
    %c0_37 = arith.constant 0 : index
    %120 = vector.load %arg5[%c0_35, %c0_36, %c0_37] : memref<4x1x128xf32, #tpu.memory_space<vmem>>, vector<1x1x128xf32>
    %121 = vector.shape_cast %120 : vector<1x1x128xf32> to vector<1x128xf32>
    %c1_i32_38 = arith.constant 1 : i32
    %122 = tpu.dynamic_rotate %117 by %c1_i32_38 dim 0 : vector<16x128xf32>, i32 -> vector<16x128xf32>
    %123 = vector.broadcast %36 : vector<16x1xf32> to vector<16x128xf32>
    %124 = arith.mulf %122, %123 : vector<16x128xf32>
    %c15_i32_39 = arith.constant 15 : i32
    %125 = tpu.dynamic_rotate %117 by %c15_i32_39 dim 0 : vector<16x128xf32>, i32 -> vector<16x128xf32>
    %126 = vector.broadcast %48 : vector<16x1xf32> to vector<16x128xf32>
    %127 = arith.mulf %125, %126 : vector<16x128xf32>
    %128 = tpu.concatenate %124, %117, %127 in 1 : vector<16x128xf32>, vector<16x128xf32>, vector<16x128xf32> -> vector<16x384xf32>
    %129 = arith.truncf %128 : vector<16x384xf32> to vector<16x384xbf16>
    %cst_40 = arith.constant dense<0.000000e+00> : vector<16x128xf32>
    %130 = tpu.matmul %129, %119, %cst_40 {dimension_numbers = #tpu.dot_dimension_numbers<[1], [0], [0], [1], [0, 0, 1, 1], [], []>} : vector<16x384xbf16>, vector<384x128xbf16>, vector<16x128xf32> -> vector<16x128xf32>
    %131 = vector.broadcast %121 : vector<1x128xf32> to vector<16x128xf32>
    %132 = arith.addf %130, %131 : vector<16x128xf32>
    %cst_41 = arith.constant 0.000000e+00 : f32
    %133 = vector.broadcast %cst_41 : f32 to vector<16x128xf32>
    %134 = arith.cmpf ogt, %132, %133 : vector<16x128xf32>
    %cst_42 = arith.constant 0.000000e+00 : f32
    %135 = vector.broadcast %cst_42 : f32 to vector<16x128xf32>
    %136 = arith.minimumf %132, %135 : vector<16x128xf32>
    %137 = math.exp %136 : vector<16x128xf32>
    %cst_43 = arith.constant 1.000000e+00 : f32
    %138 = vector.broadcast %cst_43 : f32 to vector<16x128xf32>
    %139 = arith.subf %137, %138 : vector<16x128xf32>
    %140 = arith.select %134, %132, %139 : vector<16x128xi1>, vector<16x128xf32>
    %141 = arith.addf %140, %95 : vector<16x128xf32>
    %142 = vector.shape_cast %141 : vector<16x128xf32> to vector<1x16x128xf32>
    %cst_44 = arith.constant dense<0.000000e+00> : vector<1x128xf32>
    %143 = vector.multi_reduction <add>, %142, %cst_44 [1] : vector<1x16x128xf32> to vector<1x128xf32>
    %144 = vector.shape_cast %143 : vector<1x128xf32> to vector<1x1x128xf32>
    %cst_45 = arith.constant 6.250000e-02 : f32
    %145 = vector.broadcast %cst_45 : f32 to vector<1x1x128xf32>
    %146 = arith.mulf %144, %145 : vector<1x1x128xf32>
    %147 = arith.mulf %142, %142 : vector<1x16x128xf32>
    %cst_46 = arith.constant dense<0.000000e+00> : vector<1x128xf32>
    %148 = vector.multi_reduction <add>, %147, %cst_46 [1] : vector<1x16x128xf32> to vector<1x128xf32>
    %149 = vector.shape_cast %148 : vector<1x128xf32> to vector<1x1x128xf32>
    %cst_47 = arith.constant 6.250000e-02 : f32
    %150 = vector.broadcast %cst_47 : f32 to vector<1x1x128xf32>
    %151 = arith.mulf %149, %150 : vector<1x1x128xf32>
    %152 = arith.mulf %146, %146 : vector<1x1x128xf32>
    %153 = arith.subf %151, %152 : vector<1x1x128xf32>
    %cst_48 = arith.constant 0.000000e+00 : f32
    %154 = vector.broadcast %cst_48 : f32 to vector<1x1x128xf32>
    %155 = arith.maximumf %153, %154 : vector<1x1x128xf32>
    %cst_49 = arith.constant 9.99999974E-6 : f32
    %156 = vector.broadcast %cst_49 : f32 to vector<1x1x128xf32>
    %157 = arith.addf %155, %156 : vector<1x1x128xf32>
    %158 = math.rsqrt %157 : vector<1x1x128xf32>
    %159 = vector.broadcast %146 : vector<1x1x128xf32> to vector<1x16x128xf32>
    %160 = arith.subf %142, %159 : vector<1x16x128xf32>
    %161 = vector.broadcast %158 : vector<1x1x128xf32> to vector<1x16x128xf32>
    %162 = arith.mulf %160, %161 : vector<1x16x128xf32>
    %163 = vector.shape_cast %162 : vector<1x16x128xf32> to vector<16x128xf32>
    %c1 = arith.constant 1 : index
    %c0_50 = arith.constant 0 : index
    %c0_51 = arith.constant 0 : index
    %164 = vector.load %arg4[%c1, %c0_50, %c0_51] : memref<4x384x128xbf16, #tpu.memory_space<vmem>>, vector<1x384x128xbf16>
    %165 = vector.shape_cast %164 : vector<1x384x128xbf16> to vector<384x128xbf16>
    %c1_52 = arith.constant 1 : index
    %c0_53 = arith.constant 0 : index
    %c0_54 = arith.constant 0 : index
    %166 = vector.load %arg5[%c1_52, %c0_53, %c0_54] : memref<4x1x128xf32, #tpu.memory_space<vmem>>, vector<1x1x128xf32>
    %167 = vector.shape_cast %166 : vector<1x1x128xf32> to vector<1x128xf32>
    %c2_i32_55 = arith.constant 2 : i32
    %168 = tpu.dynamic_rotate %163 by %c2_i32_55 dim 0 : vector<16x128xf32>, i32 -> vector<16x128xf32>
    %169 = vector.broadcast %24 : vector<16x1xf32> to vector<16x128xf32>
    %170 = arith.mulf %168, %169 : vector<16x128xf32>
    %c14_i32 = arith.constant 14 : i32
    %171 = tpu.dynamic_rotate %163 by %c14_i32 dim 0 : vector<16x128xf32>, i32 -> vector<16x128xf32>
    %172 = vector.broadcast %60 : vector<16x1xf32> to vector<16x128xf32>
    %173 = arith.mulf %171, %172 : vector<16x128xf32>
    %174 = tpu.concatenate %170, %163, %173 in 1 : vector<16x128xf32>, vector<16x128xf32>, vector<16x128xf32> -> vector<16x384xf32>
    %175 = arith.truncf %174 : vector<16x384xf32> to vector<16x384xbf16>
    %cst_56 = arith.constant dense<0.000000e+00> : vector<16x128xf32>
    %176 = tpu.matmul %175, %165, %cst_56 {dimension_numbers = #tpu.dot_dimension_numbers<[1], [0], [0], [1], [0, 0, 1, 1], [], []>} : vector<16x384xbf16>, vector<384x128xbf16>, vector<16x128xf32> -> vector<16x128xf32>
    %177 = vector.broadcast %167 : vector<1x128xf32> to vector<16x128xf32>
    %178 = arith.addf %176, %177 : vector<16x128xf32>
    %cst_57 = arith.constant 0.000000e+00 : f32
    %179 = vector.broadcast %cst_57 : f32 to vector<16x128xf32>
    %180 = arith.cmpf ogt, %178, %179 : vector<16x128xf32>
    %cst_58 = arith.constant 0.000000e+00 : f32
    %181 = vector.broadcast %cst_58 : f32 to vector<16x128xf32>
    %182 = arith.minimumf %178, %181 : vector<16x128xf32>
    %183 = math.exp %182 : vector<16x128xf32>
    %cst_59 = arith.constant 1.000000e+00 : f32
    %184 = vector.broadcast %cst_59 : f32 to vector<16x128xf32>
    %185 = arith.subf %183, %184 : vector<16x128xf32>
    %186 = arith.select %180, %178, %185 : vector<16x128xi1>, vector<16x128xf32>
    %187 = arith.addf %186, %141 : vector<16x128xf32>
    %188 = vector.shape_cast %187 : vector<16x128xf32> to vector<1x16x128xf32>
    %cst_60 = arith.constant dense<0.000000e+00> : vector<1x128xf32>
    %189 = vector.multi_reduction <add>, %188, %cst_60 [1] : vector<1x16x128xf32> to vector<1x128xf32>
    %190 = vector.shape_cast %189 : vector<1x128xf32> to vector<1x1x128xf32>
    %cst_61 = arith.constant 6.250000e-02 : f32
    %191 = vector.broadcast %cst_61 : f32 to vector<1x1x128xf32>
    %192 = arith.mulf %190, %191 : vector<1x1x128xf32>
    %193 = arith.mulf %188, %188 : vector<1x16x128xf32>
    %cst_62 = arith.constant dense<0.000000e+00> : vector<1x128xf32>
    %194 = vector.multi_reduction <add>, %193, %cst_62 [1] : vector<1x16x128xf32> to vector<1x128xf32>
    %195 = vector.shape_cast %194 : vector<1x128xf32> to vector<1x1x128xf32>
    %cst_63 = arith.constant 6.250000e-02 : f32
    %196 = vector.broadcast %cst_63 : f32 to vector<1x1x128xf32>
    %197 = arith.mulf %195, %196 : vector<1x1x128xf32>
    %198 = arith.mulf %192, %192 : vector<1x1x128xf32>
    %199 = arith.subf %197, %198 : vector<1x1x128xf32>
    %cst_64 = arith.constant 0.000000e+00 : f32
    %200 = vector.broadcast %cst_64 : f32 to vector<1x1x128xf32>
    %201 = arith.maximumf %199, %200 : vector<1x1x128xf32>
    %cst_65 = arith.constant 9.99999974E-6 : f32
    %202 = vector.broadcast %cst_65 : f32 to vector<1x1x128xf32>
    %203 = arith.addf %201, %202 : vector<1x1x128xf32>
    %204 = math.rsqrt %203 : vector<1x1x128xf32>
    %205 = vector.broadcast %192 : vector<1x1x128xf32> to vector<1x16x128xf32>
    %206 = arith.subf %188, %205 : vector<1x16x128xf32>
    %207 = vector.broadcast %204 : vector<1x1x128xf32> to vector<1x16x128xf32>
    %208 = arith.mulf %206, %207 : vector<1x16x128xf32>
    %209 = vector.shape_cast %208 : vector<1x16x128xf32> to vector<16x128xf32>
    %c2 = arith.constant 2 : index
    %c0_66 = arith.constant 0 : index
    %c0_67 = arith.constant 0 : index
    %210 = vector.load %arg4[%c2, %c0_66, %c0_67] : memref<4x384x128xbf16, #tpu.memory_space<vmem>>, vector<1x384x128xbf16>
    %211 = vector.shape_cast %210 : vector<1x384x128xbf16> to vector<384x128xbf16>
    %c2_68 = arith.constant 2 : index
    %c0_69 = arith.constant 0 : index
    %c0_70 = arith.constant 0 : index
    %212 = vector.load %arg5[%c2_68, %c0_69, %c0_70] : memref<4x1x128xf32, #tpu.memory_space<vmem>>, vector<1x1x128xf32>
    %213 = vector.shape_cast %212 : vector<1x1x128xf32> to vector<1x128xf32>
    %c4_i32_71 = arith.constant 4 : i32
    %214 = tpu.dynamic_rotate %209 by %c4_i32_71 dim 0 : vector<16x128xf32>, i32 -> vector<16x128xf32>
    %215 = vector.broadcast %12 : vector<16x1xf32> to vector<16x128xf32>
    %216 = arith.mulf %214, %215 : vector<16x128xf32>
    %c12_i32 = arith.constant 12 : i32
    %217 = tpu.dynamic_rotate %209 by %c12_i32 dim 0 : vector<16x128xf32>, i32 -> vector<16x128xf32>
    %218 = vector.broadcast %72 : vector<16x1xf32> to vector<16x128xf32>
    %219 = arith.mulf %217, %218 : vector<16x128xf32>
    %220 = tpu.concatenate %216, %209, %219 in 1 : vector<16x128xf32>, vector<16x128xf32>, vector<16x128xf32> -> vector<16x384xf32>
    %221 = arith.truncf %220 : vector<16x384xf32> to vector<16x384xbf16>
    %cst_72 = arith.constant dense<0.000000e+00> : vector<16x128xf32>
    %222 = tpu.matmul %221, %211, %cst_72 {dimension_numbers = #tpu.dot_dimension_numbers<[1], [0], [0], [1], [0, 0, 1, 1], [], []>} : vector<16x384xbf16>, vector<384x128xbf16>, vector<16x128xf32> -> vector<16x128xf32>
    %223 = vector.broadcast %213 : vector<1x128xf32> to vector<16x128xf32>
    %224 = arith.addf %222, %223 : vector<16x128xf32>
    %cst_73 = arith.constant 0.000000e+00 : f32
    %225 = vector.broadcast %cst_73 : f32 to vector<16x128xf32>
    %226 = arith.cmpf ogt, %224, %225 : vector<16x128xf32>
    %cst_74 = arith.constant 0.000000e+00 : f32
    %227 = vector.broadcast %cst_74 : f32 to vector<16x128xf32>
    %228 = arith.minimumf %224, %227 : vector<16x128xf32>
    %229 = math.exp %228 : vector<16x128xf32>
    %cst_75 = arith.constant 1.000000e+00 : f32
    %230 = vector.broadcast %cst_75 : f32 to vector<16x128xf32>
    %231 = arith.subf %229, %230 : vector<16x128xf32>
    %232 = arith.select %226, %224, %231 : vector<16x128xi1>, vector<16x128xf32>
    %233 = arith.addf %232, %187 : vector<16x128xf32>
    %234 = vector.shape_cast %233 : vector<16x128xf32> to vector<1x16x128xf32>
    %cst_76 = arith.constant dense<0.000000e+00> : vector<1x128xf32>
    %235 = vector.multi_reduction <add>, %234, %cst_76 [1] : vector<1x16x128xf32> to vector<1x128xf32>
    %236 = vector.shape_cast %235 : vector<1x128xf32> to vector<1x1x128xf32>
    %cst_77 = arith.constant 6.250000e-02 : f32
    %237 = vector.broadcast %cst_77 : f32 to vector<1x1x128xf32>
    %238 = arith.mulf %236, %237 : vector<1x1x128xf32>
    %239 = arith.mulf %234, %234 : vector<1x16x128xf32>
    %cst_78 = arith.constant dense<0.000000e+00> : vector<1x128xf32>
    %240 = vector.multi_reduction <add>, %239, %cst_78 [1] : vector<1x16x128xf32> to vector<1x128xf32>
    %241 = vector.shape_cast %240 : vector<1x128xf32> to vector<1x1x128xf32>
    %cst_79 = arith.constant 6.250000e-02 : f32
    %242 = vector.broadcast %cst_79 : f32 to vector<1x1x128xf32>
    %243 = arith.mulf %241, %242 : vector<1x1x128xf32>
    %244 = arith.mulf %238, %238 : vector<1x1x128xf32>
    %245 = arith.subf %243, %244 : vector<1x1x128xf32>
    %cst_80 = arith.constant 0.000000e+00 : f32
    %246 = vector.broadcast %cst_80 : f32 to vector<1x1x128xf32>
    %247 = arith.maximumf %245, %246 : vector<1x1x128xf32>
    %cst_81 = arith.constant 9.99999974E-6 : f32
    %248 = vector.broadcast %cst_81 : f32 to vector<1x1x128xf32>
    %249 = arith.addf %247, %248 : vector<1x1x128xf32>
    %250 = math.rsqrt %249 : vector<1x1x128xf32>
    %251 = vector.broadcast %238 : vector<1x1x128xf32> to vector<1x16x128xf32>
    %252 = arith.subf %234, %251 : vector<1x16x128xf32>
    %253 = vector.broadcast %250 : vector<1x1x128xf32> to vector<1x16x128xf32>
    %254 = arith.mulf %252, %253 : vector<1x16x128xf32>
    %255 = vector.shape_cast %254 : vector<1x16x128xf32> to vector<16x128xf32>
    %c3 = arith.constant 3 : index
    %c0_82 = arith.constant 0 : index
    %c0_83 = arith.constant 0 : index
    %256 = vector.load %arg4[%c3, %c0_82, %c0_83] : memref<4x384x128xbf16, #tpu.memory_space<vmem>>, vector<1x384x128xbf16>
    %257 = vector.shape_cast %256 : vector<1x384x128xbf16> to vector<384x128xbf16>
    %c3_84 = arith.constant 3 : index
    %c0_85 = arith.constant 0 : index
    %c0_86 = arith.constant 0 : index
    %258 = vector.load %arg5[%c3_84, %c0_85, %c0_86] : memref<4x1x128xf32, #tpu.memory_space<vmem>>, vector<1x1x128xf32>
    %259 = vector.shape_cast %258 : vector<1x1x128xf32> to vector<1x128xf32>
    %c1_i32_87 = arith.constant 1 : i32
    %260 = tpu.dynamic_rotate %255 by %c1_i32_87 dim 0 : vector<16x128xf32>, i32 -> vector<16x128xf32>
    %261 = vector.broadcast %36 : vector<16x1xf32> to vector<16x128xf32>
    %262 = arith.mulf %260, %261 : vector<16x128xf32>
    %c15_i32_88 = arith.constant 15 : i32
    %263 = tpu.dynamic_rotate %255 by %c15_i32_88 dim 0 : vector<16x128xf32>, i32 -> vector<16x128xf32>
    %264 = vector.broadcast %48 : vector<16x1xf32> to vector<16x128xf32>
    %265 = arith.mulf %263, %264 : vector<16x128xf32>
    %266 = tpu.concatenate %262, %255, %265 in 1 : vector<16x128xf32>, vector<16x128xf32>, vector<16x128xf32> -> vector<16x384xf32>
    %267 = arith.truncf %266 : vector<16x384xf32> to vector<16x384xbf16>
    %cst_89 = arith.constant dense<0.000000e+00> : vector<16x128xf32>
    %268 = tpu.matmul %267, %257, %cst_89 {dimension_numbers = #tpu.dot_dimension_numbers<[1], [0], [0], [1], [0, 0, 1, 1], [], []>} : vector<16x384xbf16>, vector<384x128xbf16>, vector<16x128xf32> -> vector<16x128xf32>
    %269 = vector.broadcast %259 : vector<1x128xf32> to vector<16x128xf32>
    %270 = arith.addf %268, %269 : vector<16x128xf32>
    %cst_90 = arith.constant 0.000000e+00 : f32
    %271 = vector.broadcast %cst_90 : f32 to vector<16x128xf32>
    %272 = arith.cmpf ogt, %270, %271 : vector<16x128xf32>
    %cst_91 = arith.constant 0.000000e+00 : f32
    %273 = vector.broadcast %cst_91 : f32 to vector<16x128xf32>
    %274 = arith.minimumf %270, %273 : vector<16x128xf32>
    %275 = math.exp %274 : vector<16x128xf32>
    %cst_92 = arith.constant 1.000000e+00 : f32
    %276 = vector.broadcast %cst_92 : f32 to vector<16x128xf32>
    %277 = arith.subf %275, %276 : vector<16x128xf32>
    %278 = arith.select %272, %270, %277 : vector<16x128xi1>, vector<16x128xf32>
    %279 = arith.addf %278, %233 : vector<16x128xf32>
    %280 = vector.shape_cast %279 : vector<16x128xf32> to vector<1x16x128xf32>
    %c0_93 = arith.constant 0 : index
    %c0_94 = arith.constant 0 : index
    %c0_95 = arith.constant 0 : index
    %281 = vector.load %arg6[%c0_93, %c0_94, %c0_95] : memref<1x16x128xf32, #tpu.memory_space<vmem>>, vector<1x16x128xf32>
    tpu.vector_store %arg6[%c0_93, %c0_94, %c0_95], %280 {strides = array<i32>} : memref<1x16x128xf32, #tpu.memory_space<vmem>>, vector<1x16x128xf32>,
    return
  }
  func.func @transform_0(%arg0: i32) -> (i32, i32, i32) {
    %c0_i32 = arith.constant 0 : i32
    %c0_i32_0 = arith.constant 0 : i32
    %c0_i32_1 = arith.constant 0 : i32
    return %arg0, %c0_i32, %c0_i32_0 : i32, i32, i32
  }
  func.func @transform_1(%arg0: i32) -> (i32, i32) {
    %c0_i32 = arith.constant 0 : i32
    %c0_i32_0 = arith.constant 0 : i32
    %c0_i32_1 = arith.constant 0 : i32
    return %c0_i32, %c0_i32_0 : i32, i32
  }
  func.func @transform_2(%arg0: i32) -> (i32, i32) {
    %c0_i32 = arith.constant 0 : i32
    %c0_i32_0 = arith.constant 0 : i32
    %c0_i32_1 = arith.constant 0 : i32
    return %c0_i32, %c0_i32_0 : i32, i32
  }
  func.func @transform_3(%arg0: i32) -> (i32, i32, i32) {
    %c0_i32 = arith.constant 0 : i32
    %c0_i32_0 = arith.constant 0 : i32
    %c0_i32_1 = arith.constant 0 : i32
    %c0_i32_2 = arith.constant 0 : i32
    return %c0_i32, %c0_i32_0, %c0_i32_1 : i32, i32, i32
  }
  func.func @transform_4(%arg0: i32) -> (i32, i32, i32) {
    %c0_i32 = arith.constant 0 : i32
    %c0_i32_0 = arith.constant 0 : i32
    %c0_i32_1 = arith.constant 0 : i32
    %c0_i32_2 = arith.constant 0 : i32
    return %c0_i32, %c0_i32_0, %c0_i32_1 : i32, i32, i32
  }
  func.func @transform_5(%arg0: i32) -> (i32, i32, i32) {
    %c0_i32 = arith.constant 0 : i32
    %c0_i32_0 = arith.constant 0 : i32
    %c0_i32_1 = arith.constant 0 : i32
    return %arg0, %c0_i32, %c0_i32_0 : i32, i32, i32
  }
}

</mosaic_0001>

<llo_original>
// kernel: local_features.1
$region0: #{local_features.1}
  #allocation0 [shape = 'u32[]', space=smem, size = 0x4, offset = 0x4, fixed_abs, tag = 'smem constant byte address 0x4 - core index']
  #allocation1 [shape = 'u32[72,128]{1,0:T(1,128)}', space=vmem, size = 0x9000, scoped, tag = 'internal scratch']
  %s0 = inlined_call_operand.vmem [shape: f32[2,16,8], index: 0, kind: input, shape index: {}]
  %s1 = inlined_call_operand.vmem [shape: bf16[24,128], index: 1, kind: input, shape index: {}]
  %s2 = inlined_call_operand.vmem [shape: f32[1,128], index: 2, kind: input, shape index: {}]
  %s3 = inlined_call_operand.vmem [shape: bf16[4,384,128], index: 3, kind: input, shape index: {}]
  %s4 = inlined_call_operand.vmem [shape: f32[4,1,128], index: 4, kind: input, shape index: {}]
  %s5 = inlined_call_operand.vmem [shape: f32[2,16,128], index: 5, kind: output, shape index: {}]
  %s6 = sld [smem:[#allocation0]]
  $region53: #{local_features.1} parent=0
    _
  %s8 = ssub.s32 1, %s6
  %s9 = scalar_select 0, %s8, %s6
  loop: start=0, step=1, limit=4
  $region2: #{local_features.1} parent=0 // loop_pre_header
    _
  $region3: #{local_features.1} parent=0 // loop_header
    %s11 = sphi 0, %s15
    %p12 = scmp.ge.s32.totalorder %s11, 4
    %s21 = sphi 0, %s23
    %s24 = sphi 0, %s21
    %s25 = sphi 0, %s24
    %s41 = sphi 0, %s25
    %s45 = sphi 0, %s45
    %s47 = sphi 0, %s45
    %s48 = sphi 0, %s47
    %s62 = sphi 0, %s48
    %s66 = sphi 0, %s66
    %s68 = sphi 0, %s66
    %s69 = sphi 0, %s68
    %s83 = sphi 0, %s69
    %s87 = sphi 0, %s87
    %s89 = sphi 0, %s87
    %s90 = sphi 0, %s89
    %s104 = sphi 0, %s90
    %s108 = sphi 0, %s108
    %s110 = sphi 0, %s108
    %s111 = sphi 0, %s110
    %s125 = sphi 0, %s111
    %s131 = sphi 0, %s133
    %s134 = sphi 0, %s131
    %s135 = sphi 0, %s134
    %s151 = sphi 0, %s135
  $region4: #{local_features.1} parent=0 // loop_header_branch
    %14 = sbr.rel (%p12) target = $region8
  $region5: #{local_features.1} parent=0 // loop_body
    %s16 = ssub.s32 %s11, 1
    %s17 = ssub.s32 %s11, 2
    %s18 = sadd.s32 %s11, 1
    %s19 = ssub.s32 %s11, %s18
    %p20 = scmp.eq.s32.totalorder %s19, 0
    %s22 = sadd.s32 %s21, 1
    %s23 = scalar_select %p20, %s21, %s22
    %p26 = pneg %p20
    %p27 = scmp.eq.s32.totalorder %s11, 1
    %p28 = por %p26, %p27
    %p29 = scmp.ne.s32.totalorder %s21, %s24
    %p30 = scmp.eq.s32.totalorder %s11, 0
    %p31 = por %p29, %p30
    %p32 = scmp.ne.s32.totalorder %s21, %s24
    %p33 = scmp.eq.s32.totalorder %s16, 1
    %p34 = por %p32, %p33
    %p35 = scmp.ne.s32.totalorder %s24, %s25
    %p36 = scmp.eq.s32.totalorder %s16, 0
    %p37 = por %p35, %p36
    %p38 = scmp.ne.s32.totalorder %s24, %s25
    %p39 = scmp.eq.s32.totalorder %s17, 1
    %p40 = por %p38, %p39
    %p42 = scmp.ne.s32.totalorder %s25, %s41
    %p43 = scmp.eq.s32.totalorder %s17, 0
    %p44 = por %p42, %p43
    %s46 = sadd.s32 %s45, 1
    %p49 = scmp.eq.s32.totalorder %s11, 1
    %p50 = scmp.ne.s32.totalorder %s45, %s47
    %p51 = scmp.eq.s32.totalorder %s11, 0
    %p52 = por %p50, %p51
    %p53 = scmp.ne.s32.totalorder %s45, %s47
    %p54 = scmp.eq.s32.totalorder %s16, 1
    %p55 = por %p53, %p54
    %p56 = scmp.ne.s32.totalorder %s47, %s48
    %p57 = scmp.eq.s32.totalorder %s16, 0
    %p58 = por %p56, %p57
    %p59 = scmp.ne.s32.totalorder %s47, %s48
    %p60 = scmp.eq.s32.totalorder %s17, 1
    %p61 = por %p59, %p60
    %p63 = scmp.ne.s32.totalorder %s48, %s62
    %p64 = scmp.eq.s32.totalorder %s17, 0
    %p65 = por %p63, %p64
    %s67 = sadd.s32 %s66, 1
    %p70 = scmp.eq.s32.totalorder %s11, 1
    %p71 = scmp.ne.s32.totalorder %s66, %s68
    %p72 = scmp.eq.s32.totalorder %s11, 0
    %p73 = por %p71, %p72
    %p74 = scmp.ne.s32.totalorder %s66, %s68
    %p75 = scmp.eq.s32.totalorder %s16, 1
    %p76 = por %p74, %p75
    %p77 = scmp.ne.s32.totalorder %s68, %s69
    %p78 = scmp.eq.s32.totalorder %s16, 0
    %p79 = por %p77, %p78
    %p80 = scmp.ne.s32.totalorder %s68, %s69
    %p81 = scmp.eq.s32.totalorder %s17, 1
    %p82 = por %p80, %p81
    %p84 = scmp.ne.s32.totalorder %s69, %s83
    %p85 = scmp.eq.s32.totalorder %s17, 0
    %p86 = por %p84, %p85
    %s88 = sadd.s32 %s87, 1
    %p91 = scmp.eq.s32.totalorder %s11, 1
    %p92 = scmp.ne.s32.totalorder %s87, %s89
    %p93 = scmp.eq.s32.totalorder %s11, 0
    %p94 = por %p92, %p93
    %p95 = scmp.ne.s32.totalorder %s87, %s89
    %p96 = scmp.eq.s32.totalorder %s16, 1
    %p97 = por %p95, %p96
    %p98 = scmp.ne.s32.totalorder %s89, %s90
    %p99 = scmp.eq.s32.totalorder %s16, 0
    %p100 = por %p98, %p99
    %p101 = scmp.ne.s32.totalorder %s89, %s90
    %p102 = scmp.eq.s32.totalorder %s17, 1
    %p103 = por %p101, %p102
    %p105 = scmp.ne.s32.totalorder %s90, %s104
    %p106 = scmp.eq.s32.totalorder %s17, 0
    %p107 = por %p105, %p106
    %s109 = sadd.s32 %s108, 1
    %p112 = scmp.eq.s32.totalorder %s11, 1
    %p113 = scmp.ne.s32.totalorder %s108, %s110
    %p114 = scmp.eq.s32.totalorder %s11, 0
    %p115 = por %p113, %p114
    %p116 = scmp.ne.s32.totalorder %s108, %s110
    %p117 = scmp.eq.s32.totalorder %s16, 1
    %p118 = por %p116, %p117
    %p119 = scmp.ne.s32.totalorder %s110, %s111
    %p120 = scmp.eq.s32.totalorder %s16, 0
    %p121 = por %p119, %p120
    %p122 = scmp.ne.s32.totalorder %s110, %s111
    %p123 = scmp.eq.s32.totalorder %s17, 1
    %p124 = por %p122, %p123
    %p126 = scmp.ne.s32.totalorder %s111, %s125
    %p127 = scmp.eq.s32.totalorder %s17, 0
    %p128 = por %p126, %p127
    %s129 = ssub.s32 %s11, %s18
    %p130 = scmp.eq.s32.totalorder %s129, 0
    %s132 = sadd.s32 %s131, 1
    %s133 = scalar_select %p130, %s131, %s132
    %p136 = pneg %p130
    %p137 = scmp.eq.s32.totalorder %s11, 1
    %p138 = por %p136, %p137
    %p139 = scmp.ne.s32.totalorder %s131, %s134
    %p140 = scmp.eq.s32.totalorder %s11, 0
    %p141 = por %p139, %p140
    %p142 = scmp.ne.s32.totalorder %s131, %s134
    %p143 = scmp.eq.s32.totalorder %s16, 1
    %p144 = por %p142, %p143
    %p145 = scmp.ne.s32.totalorder %s134, %s135
    %p146 = scmp.eq.s32.totalorder %s16, 0
    %p147 = por %p145, %p146
    %p148 = scmp.ne.s32.totalorder %s134, %s135
    %p149 = scmp.eq.s32.totalorder %s17, 1
    %p150 = por %p148, %p149
    %p152 = scmp.ne.s32.totalorder %s135, %s151
    %p153 = scmp.eq.s32.totalorder %s17, 0
    %p154 = por %p152, %p153
    %p155 = scmp.le.s32.totalorder 1, %s11
    %p156 = scmp.lt.s32.totalorder %s11, 3
    %p157 = pnand %p155, %p156
    %p158 = pneg %p157
    // Predicated region
    $region9: #{local_features.1} parent=5 // pred_check
      _
    $region10: #{local_features.1} parent=5 // pred_check_branch
      %160 = sbr.rel (%p157) target = $region12
    $region11: #{local_features.1} parent=5 // pred_region
      %s161 = ssub.s32 %s11, 1
      // Predicated region
      $region13: #{local_features.1} parent=11 // pred_check
        %p162 = pneg %p58
      $region14: #{local_features.1} parent=11 // pred_check_branch
        %164 = sbr.rel (%p162) target = $region16
      $region15: #{local_features.1} parent=11 // pred_region
        _
      $region16: #{local_features.1} parent=11 // pred_fallthru
        _
      // Predicated region
      $region17: #{local_features.1} parent=11 // pred_check
        %p165 = pneg %p79
      $region18: #{local_features.1} parent=11 // pred_check_branch
        %167 = sbr.rel (%p165) target = $region20
      $region19: #{local_features.1} parent=11 // pred_region
        _
      $region20: #{local_features.1} parent=11 // pred_fallthru
        _
      // Predicated region
      $region21: #{local_features.1} parent=11 // pred_check
        %p168 = pneg %p100
      $region22: #{local_features.1} parent=11 // pred_check_branch
        %170 = sbr.rel (%p168) target = $region24
      $region23: #{local_features.1} parent=11 // pred_region
        _
      $region24: #{local_features.1} parent=11 // pred_fallthru
        _
      // Predicated region
      $region25: #{local_features.1} parent=11 // pred_check
        %p171 = pneg %p121
      $region26: #{local_features.1} parent=11 // pred_check_branch
        %173 = sbr.rel (%p171) target = $region28
      $region27: #{local_features.1} parent=11 // pred_region
        _
      $region28: #{local_features.1} parent=11 // pred_fallthru
        _
    $region12: #{local_features.1} parent=5 // pred_fallthru
      _
    %p174 = scmp.lt.s32.totalorder %s11, 2
    // Predicated region
    $region29: #{local_features.1} parent=5 // pred_check
      %p175 = pneg %p174
    $region30: #{local_features.1} parent=5 // pred_check_branch
      %177 = sbr.rel (%p175) target = $region32
    $region31: #{local_features.1} parent=5 // pred_region
      // Predicated region
      $region33: #{local_features.1} parent=31 // pred_check
        %p178 = pneg %p31
      $region34: #{local_features.1} parent=31 // pred_check_branch
        %180 = sbr.rel (%p178) target = $region36
      $region35: #{local_features.1} parent=31 // pred_region
        %p181 = scmp.lt.s32.totalorder %s11, 1
        %s182 = scalar_select %p181, %s11, 1
        %s183 = smul.addr %s182, 2
        %s184 = smul.addr %s183, 8
        %s185 = scalar_lea.vmem %s0, %s184
      $region36: #{local_features.1} parent=31 // pred_fallthru
        _
    $region32: #{local_features.1} parent=5 // pred_fallthru
      _
    %p186 = scmp.le.s32.totalorder 1, %s11
    %p187 = scmp.lt.s32.totalorder %s11, 3
    %p188 = pnand %p186, %p187
    %p189 = pneg %p188
    // Predicated region
    $region37: #{local_features.1} parent=5 // pred_check
      _
    $region38: #{local_features.1} parent=5 // pred_check_branch
      %191 = sbr.rel (%p188) target = $region40
    $region39: #{local_features.1} parent=5 // pred_region
      %s192 = ssub.s32 %s11, 1
      %p193 = scmp.lt.s32.totalorder %s16, 1
      %s194 = scalar_select %p193, %s16, 1
      %s195 = smul.addr %s194, 2
      %s196 = smul.addr %s195, 8
      %s197 = scalar_lea.vmem %s0, %s196
      %p198 = pneg %p37
      %p199 = pneg %p34
      %p200 = pneg %p58
      %p201 = pneg %p55
      %p202 = pneg %p79
      %p203 = pneg %p76
      %p204 = pneg %p100
      %p205 = pneg %p97
      %p206 = pneg %p121
      %p207 = pneg %p118
      %p208 = pneg %p147
      %p209 = pneg %p144
      %p210 = scmp.lt.s32.totalorder %s16, 1
      %s211 = scalar_select %p210, %s16, 1
      %s212 = smul.addr %s211, 2
      %s213 = smul.addr %s212, 8
      %s214 = scalar_lea.vmem %s5, %s213
      %p215 = scmp.lt.s32.totalorder %s16, 1
      %s216 = scalar_select %p215, %s16, 1
      %s217 = smul.addr %s216, 2
      %s218 = smul.addr %s217, 8
      %s219 = scalar_lea.vmem %s0, %s218
      %p220 = scmp.lt.s32.totalorder %s16, 1
      %s221 = scalar_select %p220, %s16, 1
      %s222 = smul.addr %s221, 2
      %s223 = smul.addr %s222, 8
      %s224 = scalar_lea.vmem %s5, %s223
      %v226 = vlaneseq
      %v227 = vshrl.u32 %v226, 7
      %v228 = vadd.s32 %v227, 8
      %v229 = vadd.s32 %v227, 4294967292
      %v230 = vadd.s32 %v228, 4294967292
      %vm231 = vcmp.ge.s32.totalorder %v229, 0
      %vm232 = vcmp.ge.s32.totalorder %v230, 0
      %vm233 = vcmp.lt.s32.totalorder %v229, 16
      %vm234 = vcmp.lt.s32.totalorder %v230, 16
      %vm235 = vmand %vm231, %vm233
      %vm236 = vmand %vm232, %vm234
      %v237 = vsel %vm235, 1, 0
      %v238 = vsel %vm236, 1, 0
      %v239 = vcvt.s32.f32 %v237
      %v240 = vcvt.s32.f32 %v238
      %v241 = vadd.s32 %v227, 4294967294
      %v242 = vadd.s32 %v228, 4294967294
      %vm243 = vcmp.ge.s32.totalorder %v241, 0
      %vm244 = vcmp.ge.s32.totalorder %v242, 0
      %vm245 = vcmp.lt.s32.totalorder %v241, 16
      %vm246 = vcmp.lt.s32.totalorder %v242, 16
      %vm247 = vmand %vm243, %vm245
      %vm248 = vmand %vm244, %vm246
      %v249 = vsel %vm247, 1, 0
      %v250 = vsel %vm248, 1, 0
      %v251 = vcvt.s32.f32 %v249
      %v252 = vcvt.s32.f32 %v250
      %v253 = vadd.s32 %v227, 4294967295
      %v254 = vadd.s32 %v228, 4294967295
      %vm255 = vcmp.ge.s32.totalorder %v253, 0
      %vm256 = vcmp.ge.s32.totalorder %v254, 0
      %vm257 = vcmp.lt.s32.totalorder %v253, 16
      %vm258 = vcmp.lt.s32.totalorder %v254, 16
      %vm259 = vmand %vm255, %vm257
      %vm260 = vmand %vm256, %vm258
      %v261 = vsel %vm259, 1, 0
      %v262 = vsel %vm260, 1, 0
      %v263 = vcvt.s32.f32 %v261
      %v264 = vcvt.s32.f32 %v262
      %v265 = vadd.s32 %v227, 1
      %v266 = vadd.s32 %v228, 1
      %vm267 = vcmp.ge.s32.totalorder %v265, 0
      %vm268 = vcmp.ge.s32.totalorder %v266, 0
      %vm269 = vcmp.lt.s32.totalorder %v265, 16
      %vm270 = vcmp.lt.s32.totalorder %v266, 16
      %vm271 = vmand %vm267, %vm269
      %vm272 = vmand %vm268, %vm270
      %v273 = vsel %vm271, 1, 0
      %v274 = vsel %vm272, 1, 0
      %v275 = vcvt.s32.f32 %v273
      %v276 = vcvt.s32.f32 %v274
      %v277 = vadd.s32 %v227, 2
      %v278 = vadd.s32 %v228, 2
      %vm279 = vcmp.ge.s32.totalorder %v277, 0
      %vm280 = vcmp.ge.s32.totalorder %v278, 0
      %vm281 = vcmp.lt.s32.totalorder %v277, 16
      %vm282 = vcmp.lt.s32.totalorder %v278, 16
      %vm283 = vmand %vm279, %vm281
      %vm284 = vmand %vm280, %vm282
      %v285 = vsel %vm283, 1, 0
      %v286 = vsel %vm284, 1, 0
      %v287 = vcvt.s32.f32 %v285
      %v288 = vcvt.s32.f32 %v286
      %v289 = vadd.s32 %v227, 4
      %v290 = vadd.s32 %v228, 4
      %vm291 = vcmp.ge.s32.totalorder %v289, 0
      %vm292 = vcmp.ge.s32.totalorder %v290, 0
      %vm293 = vcmp.lt.s32.totalorder %v289, 16
      %vm294 = vcmp.lt.s32.totalorder %v290, 16
      %vm295 = vmand %vm291, %vm293
      %vm296 = vmand %vm292, %vm294
      %v297 = vsel %vm295, 1, 0
      %v298 = vsel %vm296, 1, 0
      %v299 = vcvt.s32.f32 %v297
      %v300 = vcvt.s32.f32 %v298
      %v301 = vld [vmem:[%s219] sm:$0xff]
      %v302 = vld [vmem:[%s219 + $0x8] sm:$0xff]
      %v303 = vld [vmem:[%s1] sm:$0xf]
      %v304 = vld [vmem:[%s1 + $0x4] sm:$0xf]
      %v305 = vld [vmem:[%s1 + $0x8] sm:$0xf]
      %v306 = vld [vmem:[%s2] sm:$0x1]
      %v307 = vrot.slane %v301, 7
      %v308 = vrot.slane %v302, 7
      %vm309 = vcmp.lt.s32.totalorder %v227, 1
      %v310 = vsel %vm309, %v307, %v308
      %v311 = vsel %vm309, %v308, %v307
      %v312 = vmul.f32 %v311, %v263
      %v313 = vmul.f32 %v310, %v264
      %v314 = vrot.slane %v301, 1
      %v315 = vrot.slane %v302, 1
      %vm316 = vcmp.lt.s32.totalorder %v227, 7
      %v317 = vsel %vm316, %v314, %v315
      %v318 = vsel %vm316, %v315, %v314
      %v319 = vmul.f32 %v317, %v275
      %v320 = vmul.f32 %v318, %v276
      %323 = vrot.lane.b32.xlu0 %v301, 8
      %v324 = vpop.permute.xlu0 %323
      %325 = vrot.lane.b32.xlu0 %v302, 8
      %v326 = vpop.permute.xlu0 %325
      %331 = vrot.lane.b32.xlu0 %v319, 16
      %v332 = vpop.permute.xlu0 %331
      %333 = vrot.lane.b32.xlu0 %v320, 16
      %v334 = vpop.permute.xlu0 %333
      %vm337 = vcmask 64512
      %v338 = vsel %vm337, %v312, %v324
      %v339 = vsel %vm337, %v313, %v326
      %vm340 = vcmask 130048
      %v341 = vsel %vm340, %v338, %v332
      %v342 = vsel %vm340, %v339, %v334
      %v343 = vpack.c.bf16 %v342, %v341
      %v345 = vperm.slane %v306, 0
      %v350 = vunpack.c.l.b16 %v303
      %v351 = vunpack.c.l.b16 %v304
      %v352 = vunpack.c.l.b16 %v305
      %v353 = vpack.c.b16 %v351, %v350
      %v354 = vpack.c.b16 %v352, %v352
      %vm356 = vcmask 195584
      %v358 = vsel %vm356, %v343, 0
      %vm360 = vcmask 1043456
      %v362 = vsel %vm360, %v354, 0
      %364 = vmatpush.bf16.msra.mxu0 0
      %365 = vmatpush.bf16.msra.mxu0 0
      %366 = vmatpush.bf16.msra.mxu0 0
      %367 = vmatpush.bf16.msra.mxu0 0
      %368 = vmatpush.bf16.msra.mxu0 0
      %369 = vmatpush.bf16.msra.mxu0 0
      %370 = vmatpush.bf16.msra.mxu0 %v362
      %371 = vmatpush.bf16.msra.mxu0 %v353
      %372 = vmatmul.bf16.gmra.mxu0 %v358
      %v373 = vpop.f32.mrf.mxu0
      %v374 = vadd.f32 %v345, %v373
      %v375 = vpop.f32.mrf.mxu0
      %v376 = vadd.f32 %v345, %v375
      %377 = vdwg.mxu0
      %vm378 = vcmp.gt.f32.partialorder %v374, 0.0
      %vm379 = vcmp.gt.f32.partialorder %v376, 0.0
      %v380 = vmin.f32 %v374, 0.0
      %v381 = vmin.f32 %v376, 0.0
      %v382 = vmul.f32 %v380, 1.442695
      %v383 = vpow.pop %v382
      %v384 = vmul.f32 %v381, 1.442695
      %v385 = vpow.pop %v384
      %v386 = vsub.f32 %v383, 1.0
      %v387 = vsub.f32 %v385, 1.0
      %v388 = vsel %vm378, %v374, %v386
      %v389 = vsel %vm379, %v376, %v387
      %v390 = vadd.f32 %v388, %v389
      %v391 = vrot.slane %v390, 4
      %v392 = vadd.f32 %v390, %v391
      %v393 = vrot.slane %v392, 2
      %v394 = vadd.f32 %v392, %v393
      %v395 = vrot.slane %v394, 1
      %v396 = vadd.f32 %v394, %v395
      %v397 = vmul.f32 %v396, 0.0625
      %v398 = vmul.f32 %v388, %v388
      %v399 = vmul.f32 %v389, %v389
      %v400 = vadd.f32 %v398, %v399
      %v401 = vrot.slane %v400, 4
      %v402 = vadd.f32 %v400, %v401
      %v403 = vrot.slane %v402, 2
      %v404 = vadd.f32 %v402, %v403
      %v405 = vrot.slane %v404, 1
      %v406 = vadd.f32 %v404, %v405
      %v407 = vmul.f32 %v406, 0.0625
      %v408 = vmul.f32 %v397, %v397
      %v409 = vsub.f32 %v407, %v408
      %v410 = vmax.f32 %v409, 0.0
      %v411 = vadd.f32 %v410, 1e-05
      %v412 = vrsqrt.pop %v411
      %v413 = vmul.f32 %v412, %v411
      %v414 = vmul.f32 %v413, %v412
      %v415 = vmul.f32 0.5, %v414
      %v416 = vsub.f32 1.5, %v415
      %v417 = vmul.f32 %v412, %v416
      %vm418 = vweird.f32 %v411
      %vm419 = vweird.f32 %v412
      %vm420 = vmor %vm418, %vm419
      %v421 = vsel %vm420, %v412, %v417
      %v422 = vsub.f32 %v388, %v397
      %v423 = vsub.f32 %v389, %v397
      %v424 = vmul.f32 %v422, %v421
      %v425 = vmul.f32 %v423, %v421
      %v426 = vld [vmem:[%s3] sm:$0xf]
      %v427 = vld [vmem:[%s3 + $0x4] sm:$0xf]
      %v428 = vld [vmem:[%s3 + $0x8] sm:$0xf]
      %v429 = vld [vmem:[%s3 + $0xc] sm:$0xf]
      %v430 = vld [vmem:[%s3 + $0x10] sm:$0xf]
      %v431 = vld [vmem:[%s3 + $0x14] sm:$0xf]
      %v432 = vld [vmem:[%s3 + $0x18] sm:$0xf]
      %v433 = vld [vmem:[%s3 + $0x1c] sm:$0xf]
      %v434 = vld [vmem:[%s3 + $0x20] sm:$0xf]
      %v435 = vld [vmem:[%s3 + $0x24] sm:$0xf]
      %v436 = vld [vmem:[%s3 + $0x28] sm:$0xf]
      %v437 = vld [vmem:[%s3 + $0x2c] sm:$0xf]
      %v438 = vld [vmem:[%s3 + $0x30] sm:$0xf]
      %v439 = vld [vmem:[%s3 + $0x34] sm:$0xf]
      %v440 = vld [vmem:[%s3 + $0x38] sm:$0xf]
      %v441 = vld [vmem:[%s3 + $0x3c] sm:$0xf]
      %v442 = vld [vmem:[%s3 + $0x40] sm:$0xf]
      %v443 = vld [vmem:[%s3 + $0x44] sm:$0xf]
      %v444 = vld [vmem:[%s3 + $0x48] sm:$0xf]
      %v445 = vld [vmem:[%s3 + $0x4c] sm:$0xf]
      %v446 = vld [vmem:[%s3 + $0x50] sm:$0xf]
      %v447 = vld [vmem:[%s3 + $0x54] sm:$0xf]
      %v448 = vld [vmem:[%s3 + $0x58] sm:$0xf]
      %v449 = vld [vmem:[%s3 + $0x5c] sm:$0xf]
      %v450 = vld [vmem:[%s3 + $0x60] sm:$0xf]
      %v451 = vld [vmem:[%s3 + $0x64] sm:$0xf]
      %v452 = vld [vmem:[%s3 + $0x68] sm:$0xf]
      %v453 = vld [vmem:[%s3 + $0x6c] sm:$0xf]
      %v454 = vld [vmem:[%s3 + $0x70] sm:$0xf]
      %v455 = vld [vmem:[%s3 + $0x74] sm:$0xf]
      %v456 = vld [vmem:[%s3 + $0x78] sm:$0xf]
      %v457 = vld [vmem:[%s3 + $0x7c] sm:$0xf]
      %v458 = vld [vmem:[%s3 + $0x80] sm:$0xf]
      %v459 = vld [vmem:[%s3 + $0x84] sm:$0xf]
      %v460 = vld [vmem:[%s3 + $0x88] sm:$0xf]
      %v461 = vld [vmem:[%s3 + $0x8c] sm:$0xf]
      %v462 = vld [vmem:[%s3 + $0x90] sm:$0xf]
      %v463 = vld [vmem:[%s3 + $0x94] sm:$0xf]
      %v464 = vld [vmem:[%s3 + $0x98] sm:$0xf]
      %v465 = vld [vmem:[%s3 + $0x9c] sm:$0xf]
      %v466 = vld [vmem:[%s3 + $0xa0] sm:$0xf]
      %v467 = vld [vmem:[%s3 + $0xa4] sm:$0xf]
      %v468 = vld [vmem:[%s3 + $0xa8] sm:$0xf]
      %v469 = vld [vmem:[%s3 + $0xac] sm:$0xf]
      %v470 = vld [vmem:[%s3 + $0xb0] sm:$0xf]
      %v471 = vld [vmem:[%s3 + $0xb4] sm:$0xf]
      %v472 = vld [vmem:[%s3 + $0xb8] sm:$0xf]
      %v473 = vld [vmem:[%s3 + $0xbc] sm:$0xf]
      %v474 = vld [vmem:[%s4] sm:$0x1]
      %v475 = vrot.slane %v424, 7
      %v476 = vrot.slane %v425, 7
      %v477 = vsel %vm309, %v475, %v476
      %v478 = vsel %vm309, %v476, %v475
      %v479 = vmul.f32 %v478, %v263
      %v480 = vmul.f32 %v477, %v264
      %v481 = vrot.slane %v424, 1
      %v482 = vrot.slane %v425, 1
      %v483 = vsel %vm316, %v481, %v482
      %v484 = vsel %vm316, %v482, %v481
      %v485 = vmul.f32 %v483, %v275
      %v486 = vmul.f32 %v484, %v276
      %v487 = vpack.c.bf16 %v480, %v479
      %v488 = vpack.c.bf16 %v425, %v424
      %v489 = vpack.c.bf16 %v486, %v485
      %v491 = vperm.slane %v474, 0
      %v541 = vunpack.c.l.b16 %v426
      %v542 = vunpack.c.l.b16 %v427
      %v543 = vunpack.c.l.b16 %v428
      %v544 = vunpack.c.l.b16 %v429
      %v545 = vunpack.c.l.b16 %v430
      %v546 = vunpack.c.l.b16 %v431
      %v547 = vunpack.c.l.b16 %v432
      %v548 = vunpack.c.l.b16 %v433
      %v549 = vunpack.c.l.b16 %v434
      %v550 = vunpack.c.l.b16 %v435
      %v551 = vunpack.c.l.b16 %v436
      %v552 = vunpack.c.l.b16 %v437
      %v553 = vunpack.c.l.b16 %v438
      %v554 = vunpack.c.l.b16 %v439
      %v555 = vunpack.c.l.b16 %v440
      %v556 = vunpack.c.l.b16 %v441
      %v557 = vunpack.c.l.b16 %v442
      %v558 = vunpack.c.l.b16 %v443
      %v559 = vunpack.c.l.b16 %v444
      %v560 = vunpack.c.l.b16 %v445
      %v561 = vunpack.c.l.b16 %v446
      %v562 = vunpack.c.l.b16 %v447
      %v563 = vunpack.c.l.b16 %v448
      %v564 = vunpack.c.l.b16 %v449
      %v565 = vunpack.c.l.b16 %v450
      %v566 = vunpack.c.l.b16 %v451
      %v567 = vunpack.c.l.b16 %v452
      %v568 = vunpack.c.l.b16 %v453
      %v569 = vunpack.c.l.b16 %v454
      %v570 = vunpack.c.l.b16 %v455
      %v571 = vunpack.c.l.b16 %v456
      %v572 = vunpack.c.l.b16 %v457
      %v573 = vunpack.c.l.b16 %v458
      %v574 = vunpack.c.l.b16 %v459
      %v575 = vunpack.c.l.b16 %v460
      %v576 = vunpack.c.l.b16 %v461
      %v577 = vunpack.c.l.b16 %v462
      %v578 = vunpack.c.l.b16 %v463
      %v579 = vunpack.c.l.b16 %v464
      %v580 = vunpack.c.l.b16 %v465
      %v581 = vunpack.c.l.b16 %v466
      %v582 = vunpack.c.l.b16 %v467
      %v583 = vunpack.c.l.b16 %v468
      %v584 = vunpack.c.l.b16 %v469
      %v585 = vunpack.c.l.b16 %v470
      %v586 = vunpack.c.l.b16 %v471
      %v587 = vunpack.c.l.b16 %v472
      %v588 = vunpack.c.l.b16 %v473
      %v589 = vpack.c.b16 %v542, %v541
      %v590 = vpack.c.b16 %v544, %v543
      %v591 = vpack.c.b16 %v546, %v545
      %v592 = vpack.c.b16 %v548, %v547
      %v593 = vpack.c.b16 %v550, %v549
      %v594 = vpack.c.b16 %v552, %v551
      %v595 = vpack.c.b16 %v554, %v553
      %v596 = vpack.c.b16 %v556, %v555
      %v597 = vpack.c.b16 %v558, %v557
      %v598 = vpack.c.b16 %v560, %v559
      %v599 = vpack.c.b16 %v562, %v561
      %v600 = vpack.c.b16 %v564, %v563
      %v601 = vpack.c.b16 %v566, %v565
      %v602 = vpack.c.b16 %v568, %v567
      %v603 = vpack.c.b16 %v570, %v569
      %v604 = vpack.c.b16 %v572, %v571
      %v605 = vpack.c.b16 %v574, %v573
      %v606 = vpack.c.b16 %v576, %v575
      %v607 = vpack.c.b16 %v578, %v577
      %v608 = vpack.c.b16 %v580, %v579
      %v609 = vpack.c.b16 %v582, %v581
      %v610 = vpack.c.b16 %v584, %v583
      %v611 = vpack.c.b16 %v586, %v585
      %v612 = vpack.c.b16 %v588, %v587
      %637 = vmatpush.bf16.msra.mxu0 %v596
      %638 = vmatpush.bf16.msra.mxu0 %v595
      %639 = vmatpush.bf16.msra.mxu0 %v594
      %640 = vmatpush.bf16.msra.mxu0 %v593
      %641 = vmatpush.bf16.msra.mxu0 %v592
      %642 = vmatpush.bf16.msra.mxu0 %v591
      %643 = vmatpush.bf16.msra.mxu0 %v590
      %644 = vmatpush.bf16.msra.mxu0 %v589
      %645 = vmatmul.bf16.gmra.mxu0 %v487
      %v646 = vpop.f32.mrf.mxu0
      %v647 = vadd.f32 %v491, %v646
      %v648 = vpop.f32.mrf.mxu0
      %v649 = vadd.f32 %v491, %v648
      %650 = vdwg.mxu0
      %651 = vmatpush.bf16.msra.mxu0 %v604
      %652 = vmatpush.bf16.msra.mxu0 %v603
      %653 = vmatpush.bf16.msra.mxu0 %v602
      %654 = vmatpush.bf16.msra.mxu0 %v601
      %655 = vmatpush.bf16.msra.mxu0 %v600
      %656 = vmatpush.bf16.msra.mxu0 %v599
      %657 = vmatpush.bf16.msra.mxu0 %v598
      %658 = vmatpush.bf16.msra.mxu0 %v597
      %659 = vmatmul.bf16.gmra.mxu0 %v488
      %v660 = vpop.f32.mrf.mxu0
      %v661 = vadd.f32 %v647, %v660
      %v662 = vpop.f32.mrf.mxu0
      %v663 = vadd.f32 %v649, %v662
      %664 = vdwg.mxu0
      %665 = vmatpush.bf16.msra.mxu0 %v612
      %666 = vmatpush.bf16.msra.mxu0 %v611
      %667 = vmatpush.bf16.msra.mxu0 %v610
      %668 = vmatpush.bf16.msra.mxu0 %v609
      %669 = vmatpush.bf16.msra.mxu0 %v608
      %670 = vmatpush.bf16.msra.mxu0 %v607
      %671 = vmatpush.bf16.msra.mxu0 %v606
      %672 = vmatpush.bf16.msra.mxu0 %v605
      %673 = vmatmul.bf16.gmra.mxu0 %v489
      %v674 = vpop.f32.mrf.mxu0
      %v675 = vadd.f32 %v661, %v674
      %v676 = vpop.f32.mrf.mxu0
      %v677 = vadd.f32 %v663, %v676
      %678 = vdwg.mxu0
      %vm679 = vcmp.gt.f32.partialorder %v675, 0.0
      %vm680 = vcmp.gt.f32.partialorder %v677, 0.0
      %v681 = vmin.f32 %v675, 0.0
      %v682 = vmin.f32 %v677, 0.0
      %v683 = vmul.f32 %v681, 1.442695
      %v684 = vpow.pop %v683
      %v685 = vmul.f32 %v682, 1.442695
      %v686 = vpow.pop %v685
      %v687 = vsub.f32 %v684, 1.0
      %v688 = vsub.f32 %v686, 1.0
      %v689 = vsel %vm679, %v675, %v687
      %v690 = vsel %vm680, %v677, %v688
      %v691 = vadd.f32 %v689, %v388
      %v692 = vadd.f32 %v690, %v389
      %v693 = vadd.f32 %v691, %v692
      %v694 = vrot.slane %v693, 4
      %v695 = vadd.f32 %v693, %v694
      %v696 = vrot.slane %v695, 2
      %v697 = vadd.f32 %v695, %v696
      %v698 = vrot.slane %v697, 1
      %v699 = vadd.f32 %v697, %v698
      %v700 = vmul.f32 %v699, 0.0625
      %v701 = vmul.f32 %v691, %v691
      %v702 = vmul.f32 %v692, %v692
      %v703 = vadd.f32 %v701, %v702
      %v704 = vrot.slane %v703, 4
      %v705 = vadd.f32 %v703, %v704
      %v706 = vrot.slane %v705, 2
      %v707 = vadd.f32 %v705, %v706
      %v708 = vrot.slane %v707, 1
      %v709 = vadd.f32 %v707, %v708
      %v710 = vmul.f32 %v709, 0.0625
      %v711 = vmul.f32 %v700, %v700
      %v712 = vsub.f32 %v710, %v711
      %v713 = vmax.f32 %v712, 0.0
      %v714 = vadd.f32 %v713, 1e-05
      %v715 = vrsqrt.pop %v714
      %v716 = vmul.f32 %v715, %v714
      %v717 = vmul.f32 %v716, %v715
      %v718 = vmul.f32 0.5, %v717
      %v719 = vsub.f32 1.5, %v718
      %v720 = vmul.f32 %v715, %v719
      %vm721 = vweird.f32 %v714
      %vm722 = vweird.f32 %v715
      %vm723 = vmor %vm721, %vm722
      %v724 = vsel %vm723, %v715, %v720
      %v725 = vsub.f32 %v691, %v700
      %v726 = vsub.f32 %v692, %v700
      %v727 = vmul.f32 %v725, %v724
      %v728 = vmul.f32 %v726, %v724
      %s729 = scalar_lea.vmem %s3, 192
      %v730 = vld [vmem:[%s729] sm:$0xf]
      %v731 = vld [vmem:[%s729 + $0x4] sm:$0xf]
      %v732 = vld [vmem:[%s729 + $0x8] sm:$0xf]
      %v733 = vld [vmem:[%s729 + $0xc] sm:$0xf]
      %v734 = vld [vmem:[%s729 + $0x10] sm:$0xf]
      %v735 = vld [vmem:[%s729 + $0x14] sm:$0xf]
      %v736 = vld [vmem:[%s729 + $0x18] sm:$0xf]
      %v737 = vld [vmem:[%s729 + $0x1c] sm:$0xf]
      %v738 = vld [vmem:[%s729 + $0x20] sm:$0xf]
      %v739 = vld [vmem:[%s729 + $0x24] sm:$0xf]
      %v740 = vld [vmem:[%s729 + $0x28] sm:$0xf]
      %v741 = vld [vmem:[%s729 + $0x2c] sm:$0xf]
      %v742 = vld [vmem:[%s729 + $0x30] sm:$0xf]
      %v743 = vld [vmem:[%s729 + $0x34] sm:$0xf]
      %v744 = vld [vmem:[%s729 + $0x38] sm:$0xf]
      %v745 = vld [vmem:[%s729 + $0x3c] sm:$0xf]
      %v746 = vld [vmem:[%s729 + $0x40] sm:$0xf]
      %v747 = vld [vmem:[%s729 + $0x44] sm:$0xf]
      %v748 = vld [vmem:[%s729 + $0x48] sm:$0xf]
      %v749 = vld [vmem:[%s729 + $0x4c] sm:$0xf]
      %v750 = vld [vmem:[%s729 + $0x50] sm:$0xf]
      %v751 = vld [vmem:[%s729 + $0x54] sm:$0xf]
      %v752 = vld [vmem:[%s729 + $0x58] sm:$0xf]
      %v753 = vld [vmem:[%s729 + $0x5c] sm:$0xf]
      %v754 = vld [vmem:[%s729 + $0x60] sm:$0xf]
      %v755 = vld [vmem:[%s729 + $0x64] sm:$0xf]
      %v756 = vld [vmem:[%s729 + $0x68] sm:$0xf]
      %v757 = vld [vmem:[%s729 + $0x6c] sm:$0xf]
      %v758 = vld [vmem:[%s729 + $0x70] sm:$0xf]
      %v759 = vld [vmem:[%s729 + $0x74] sm:$0xf]
      %v760 = vld [vmem:[%s729 + $0x78] sm:$0xf]
      %v761 = vld [vmem:[%s729 + $0x7c] sm:$0xf]
      %v762 = vld [vmem:[%s729 + $0x80] sm:$0xf]
      %v763 = vld [vmem:[%s729 + $0x84] sm:$0xf]
      %v764 = vld [vmem:[%s729 + $0x88] sm:$0xf]
      %v765 = vld [vmem:[%s729 + $0x8c] sm:$0xf]
      %v766 = vld [vmem:[%s729 + $0x90] sm:$0xf]
      %v767 = vld [vmem:[%s729 + $0x94] sm:$0xf]
      %v768 = vld [vmem:[%s729 + $0x98] sm:$0xf]
      %v769 = vld [vmem:[%s729 + $0x9c] sm:$0xf]
      %v770 = vld [vmem:[%s729 + $0xa0] sm:$0xf]
      %v771 = vld [vmem:[%s729 + $0xa4] sm:$0xf]
      %v772 = vld [vmem:[%s729 + $0xa8] sm:$0xf]
      %v773 = vld [vmem:[%s729 + $0xac] sm:$0xf]
      %v774 = vld [vmem:[%s729 + $0xb0] sm:$0xf]
      %v775 = vld [vmem:[%s729 + $0xb4] sm:$0xf]
      %v776 = vld [vmem:[%s729 + $0xb8] sm:$0xf]
      %v777 = vld [vmem:[%s729 + $0xbc] sm:$0xf]
      %s778 = scalar_lea.vmem %s4, 1
      %v779 = vld [vmem:[%s778] sm:$0x1]
      %v780 = vrot.slane %v727, 6
      %v781 = vrot.slane %v728, 6
      %vm782 = vcmp.lt.s32.totalorder %v227, 2
      %v783 = vsel %vm782, %v780, %v781
      %v784 = vsel %vm782, %v781, %v780
      %v785 = vmul.f32 %v784, %v251
      %v786 = vmul.f32 %v783, %v252
      %v787 = vrot.slane %v727, 2
      %v788 = vrot.slane %v728, 2
      %vm789 = vcmp.lt.s32.totalorder %v227, 6
      %v790 = vsel %vm789, %v787, %v788
      %v791 = vsel %vm789, %v788, %v787
      %v792 = vmul.f32 %v790, %v287
      %v793 = vmul.f32 %v791, %v288
      %v794 = vpack.c.bf16 %v786, %v785
      %v795 = vpack.c.bf16 %v728, %v727
      %v796 = vpack.c.bf16 %v793, %v792
      %v798 = vperm.slane %v779, 0
      %v848 = vunpack.c.l.b16 %v730
      %v849 = vunpack.c.l.b16 %v731
      %v850 = vunpack.c.l.b16 %v732
      %v851 = vunpack.c.l.b16 %v733
      %v852 = vunpack.c.l.b16 %v734
      %v853 = vunpack.c.l.b16 %v735
      %v854 = vunpack.c.l.b16 %v736
      %v855 = vunpack.c.l.b16 %v737
      %v856 = vunpack.c.l.b16 %v738
      %v857 = vunpack.c.l.b16 %v739
      %v858 = vunpack.c.l.b16 %v740
      %v859 = vunpack.c.l.b16 %v741
      %v860 = vunpack.c.l.b16 %v742
      %v861 = vunpack.c.l.b16 %v743
      %v862 = vunpack.c.l.b16 %v744
      %v863 = vunpack.c.l.b16 %v745
      %v864 = vunpack.c.l.b16 %v746
      %v865 = vunpack.c.l.b16 %v747
      %v866 = vunpack.c.l.b16 %v748
      %v867 = vunpack.c.l.b16 %v749
      %v868 = vunpack.c.l.b16 %v750
      %v869 = vunpack.c.l.b16 %v751
      %v870 = vunpack.c.l.b16 %v752
      %v871 = vunpack.c.l.b16 %v753
      %v872 = vunpack.c.l.b16 %v754
      %v873 = vunpack.c.l.b16 %v755
      %v874 = vunpack.c.l.b16 %v756
      %v875 = vunpack.c.l.b16 %v757
      %v876 = vunpack.c.l.b16 %v758
      %v877 = vunpack.c.l.b16 %v759
      %v878 = vunpack.c.l.b16 %v760
      %v879 = vunpack.c.l.b16 %v761
      %v880 = vunpack.c.l.b16 %v762
      %v881 = vunpack.c.l.b16 %v763
      %v882 = vunpack.c.l.b16 %v764
      %v883 = vunpack.c.l.b16 %v765
      %v884 = vunpack.c.l.b16 %v766
      %v885 = vunpack.c.l.b16 %v767
      %v886 = vunpack.c.l.b16 %v768
      %v887 = vunpack.c.l.b16 %v769
      %v888 = vunpack.c.l.b16 %v770
      %v889 = vunpack.c.l.b16 %v771
      %v890 = vunpack.c.l.b16 %v772
      %v891 = vunpack.c.l.b16 %v773
      %v892 = vunpack.c.l.b16 %v774
      %v893 = vunpack.c.l.b16 %v775
      %v894 = vunpack.c.l.b16 %v776
      %v895 = vunpack.c.l.b16 %v777
      %v896 = vpack.c.b16 %v849, %v848
      %v897 = vpack.c.b16 %v851, %v850
      %v898 = vpack.c.b16 %v853, %v852
      %v899 = vpack.c.b16 %v855, %v854
      %v900 = vpack.c.b16 %v857, %v856
      %v901 = vpack.c.b16 %v859, %v858
      %v902 = vpack.c.b16 %v861, %v860
      %v903 = vpack.c.b16 %v863, %v862
      %v904 = vpack.c.b16 %v865, %v864
      %v905 = vpack.c.b16 %v867, %v866
      %v906 = vpack.c.b16 %v869, %v868
      %v907 = vpack.c.b16 %v871, %v870
      %v908 = vpack.c.b16 %v873, %v872
      %v909 = vpack.c.b16 %v875, %v874
      %v910 = vpack.c.b16 %v877, %v876
      %v911 = vpack.c.b16 %v879, %v878
      %v912 = vpack.c.b16 %v881, %v880
      %v913 = vpack.c.b16 %v883, %v882
      %v914 = vpack.c.b16 %v885, %v884
      %v915 = vpack.c.b16 %v887, %v886
      %v916 = vpack.c.b16 %v889, %v888
      %v917 = vpack.c.b16 %v891, %v890
      %v918 = vpack.c.b16 %v893, %v892
      %v919 = vpack.c.b16 %v895, %v894
      %944 = vmatpush.bf16.msra.mxu0 %v903
      %945 = vmatpush.bf16.msra.mxu0 %v902
      %946 = vmatpush.bf16.msra.mxu0 %v901
      %947 = vmatpush.bf16.msra.mxu0 %v900
      %948 = vmatpush.bf16.msra.mxu0 %v899
      %949 = vmatpush.bf16.msra.mxu0 %v898
      %950 = vmatpush.bf16.msra.mxu0 %v897
      %951 = vmatpush.bf16.msra.mxu0 %v896
      %952 = vmatmul.bf16.gmra.mxu0 %v794
      %v953 = vpop.f32.mrf.mxu0
      %v954 = vadd.f32 %v798, %v953
      %v955 = vpop.f32.mrf.mxu0
      %v956 = vadd.f32 %v798, %v955
      %957 = vdwg.mxu0
      %958 = vmatpush.bf16.msra.mxu0 %v911
      %959 = vmatpush.bf16.msra.mxu0 %v910
      %960 = vmatpush.bf16.msra.mxu0 %v909
      %961 = vmatpush.bf16.msra.mxu0 %v908
      %962 = vmatpush.bf16.msra.mxu0 %v907
      %963 = vmatpush.bf16.msra.mxu0 %v906
      %964 = vmatpush.bf16.msra.mxu0 %v905
      %965 = vmatpush.bf16.msra.mxu0 %v904
      %966 = vmatmul.bf16.gmra.mxu0 %v795
      %v967 = vpop.f32.mrf.mxu0
      %v968 = vadd.f32 %v954, %v967
      %v969 = vpop.f32.mrf.mxu0
      %v970 = vadd.f32 %v956, %v969
      %971 = vdwg.mxu0
      %972 = vmatpush.bf16.msra.mxu0 %v919
      %973 = vmatpush.bf16.msra.mxu0 %v918
      %974 = vmatpush.bf16.msra.mxu0 %v917
      %975 = vmatpush.bf16.msra.mxu0 %v916
      %976 = vmatpush.bf16.msra.mxu0 %v915
      %977 = vmatpush.bf16.msra.mxu0 %v914
      %978 = vmatpush.bf16.msra.mxu0 %v913
      %979 = vmatpush.bf16.msra.mxu0 %v912
      %980 = vmatmul.bf16.gmra.mxu0 %v796
      %v981 = vpop.f32.mrf.mxu0
      %v982 = vadd.f32 %v968, %v981
      %v983 = vpop.f32.mrf.mxu0
      %v984 = vadd.f32 %v970, %v983
      %985 = vdwg.mxu0
      %vm986 = vcmp.gt.f32.partialorder %v982, 0.0
      %vm987 = vcmp.gt.f32.partialorder %v984, 0.0
      %v988 = vmin.f32 %v982, 0.0
      %v989 = vmin.f32 %v984, 0.0
      %v990 = vmul.f32 %v988, 1.442695
      %v991 = vpow.pop %v990
      %v992 = vmul.f32 %v989, 1.442695
      %v993 = vpow.pop %v992
      %v994 = vsub.f32 %v991, 1.0
      %v995 = vsub.f32 %v993, 1.0
      %v996 = vsel %vm986, %v982, %v994
      %v997 = vsel %vm987, %v984, %v995
      %v998 = vadd.f32 %v996, %v691
      %v999 = vadd.f32 %v997, %v692
      %v1000 = vadd.f32 %v998, %v999
      %v1001 = vrot.slane %v1000, 4
      %v1002 = vadd.f32 %v1000, %v1001
      %v1003 = vrot.slane %v1002, 2
      %v1004 = vadd.f32 %v1002, %v1003
      %v1005 = vrot.slane %v1004, 1
      %v1006 = vadd.f32 %v1004, %v1005
      %v1007 = vmul.f32 %v1006, 0.0625
      %v1008 = vmul.f32 %v998, %v998
      %v1009 = vmul.f32 %v999, %v999
      %v1010 = vadd.f32 %v1008, %v1009
      %v1011 = vrot.slane %v1010, 4
      %v1012 = vadd.f32 %v1010, %v1011
      %v1013 = vrot.slane %v1012, 2
      %v1014 = vadd.f32 %v1012, %v1013
      %v1015 = vrot.slane %v1014, 1
      %v1016 = vadd.f32 %v1014, %v1015
      %v1017 = vmul.f32 %v1016, 0.0625
      %v1018 = vmul.f32 %v1007, %v1007
      %v1019 = vsub.f32 %v1017, %v1018
      %v1020 = vmax.f32 %v1019, 0.0
      %v1021 = vadd.f32 %v1020, 1e-05
      %v1022 = vrsqrt.pop %v1021
      %v1023 = vmul.f32 %v1022, %v1021
      %v1024 = vmul.f32 %v1023, %v1022
      %v1025 = vmul.f32 0.5, %v1024
      %v1026 = vsub.f32 1.5, %v1025
      %v1027 = vmul.f32 %v1022, %v1026
      %vm1028 = vweird.f32 %v1021
      %vm1029 = vweird.f32 %v1022
      %vm1030 = vmor %vm1028, %vm1029
      %v1031 = vsel %vm1030, %v1022, %v1027
      %v1032 = vsub.f32 %v998, %v1007
      %v1033 = vsub.f32 %v999, %v1007
      %v1034 = vmul.f32 %v1032, %v1031
      %v1035 = vmul.f32 %v1033, %v1031
      %s1036 = scalar_lea.vmem %s3, 384
      %v1037 = vld [vmem:[%s1036] sm:$0xf]
      %v1038 = vld [vmem:[%s1036 + $0x4] sm:$0xf]
      %v1039 = vld [vmem:[%s1036 + $0x8] sm:$0xf]
      %v1040 = vld [vmem:[%s1036 + $0xc] sm:$0xf]
      %v1041 = vld [vmem:[%s1036 + $0x10] sm:$0xf]
      %v1042 = vld [vmem:[%s1036 + $0x14] sm:$0xf]
      %v1043 = vld [vmem:[%s1036 + $0x18] sm:$0xf]
      %v1044 = vld [vmem:[%s1036 + $0x1c] sm:$0xf]
      %v1045 = vld [vmem:[%s1036 + $0x20] sm:$0xf]
      %v1046 = vld [vmem:[%s1036 + $0x24] sm:$0xf]
      %v1047 = vld [vmem:[%s1036 + $0x28] sm:$0xf]
      %v1048 = vld [vmem:[%s1036 + $0x2c] sm:$0xf]
      %v1049 = vld [vmem:[%s1036 + $0x30] sm:$0xf]
      %v1050 = vld [vmem:[%s1036 + $0x34] sm:$0xf]
      %v1051 = vld [vmem:[%s1036 + $0x38] sm:$0xf]
      %v1052 = vld [vmem:[%s1036 + $0x3c] sm:$0xf]
      %v1053 = vld [vmem:[%s1036 + $0x40] sm:$0xf]
      %v1054 = vld [vmem:[%s1036 + $0x44] sm:$0xf]
      %v1055 = vld [vmem:[%s1036 + $0x48] sm:$0xf]
      %v1056 = vld [vmem:[%s1036 + $0x4c] sm:$0xf]
      %v1057 = vld [vmem:[%s1036 + $0x50] sm:$0xf]
      %v1058 = vld [vmem:[%s1036 + $0x54] sm:$0xf]
      %v1059 = vld [vmem:[%s1036 + $0x58] sm:$0xf]
      %v1060 = vld [vmem:[%s1036 + $0x5c] sm:$0xf]
      %v1061 = vld [vmem:[%s1036 + $0x60] sm:$0xf]
      %v1062 = vld [vmem:[%s1036 + $0x64] sm:$0xf]
      %v1063 = vld [vmem:[%s1036 + $0x68] sm:$0xf]
      %v1064 = vld [vmem:[%s1036 + $0x6c] sm:$0xf]
      %v1065 = vld [vmem:[%s1036 + $0x70] sm:$0xf]
      %v1066 = vld [vmem:[%s1036 + $0x74] sm:$0xf]
      %v1067 = vld [vmem:[%s1036 + $0x78] sm:$0xf]
      %v1068 = vld [vmem:[%s1036 + $0x7c] sm:$0xf]
      %v1069 = vld [vmem:[%s1036 + $0x80] sm:$0xf]
      %v1070 = vld [vmem:[%s1036 + $0x84] sm:$0xf]
      %v1071 = vld [vmem:[%s1036 + $0x88] sm:$0xf]
      %v1072 = vld [vmem:[%s1036 + $0x8c] sm:$0xf]
      %v1073 = vld [vmem:[%s1036 + $0x90] sm:$0xf]
      %v1074 = vld [vmem:[%s1036 + $0x94] sm:$0xf]
      %v1075 = vld [vmem:[%s1036 + $0x98] sm:$0xf]
      %v1076 = vld [vmem:[%s1036 + $0x9c] sm:$0xf]
      %v1077 = vld [vmem:[%s1036 + $0xa0] sm:$0xf]
      %v1078 = vld [vmem:[%s1036 + $0xa4] sm:$0xf]
      %v1079 = vld [vmem:[%s1036 + $0xa8] sm:$0xf]
      %v1080 = vld [vmem:[%s1036 + $0xac] sm:$0xf]
      %v1081 = vld [vmem:[%s1036 + $0xb0] sm:$0xf]
      %v1082 = vld [vmem:[%s1036 + $0xb4] sm:$0xf]
      %v1083 = vld [vmem:[%s1036 + $0xb8] sm:$0xf]
      %v1084 = vld [vmem:[%s1036 + $0xbc] sm:$0xf]
      %s1085 = scalar_lea.vmem %s4, 2
      %v1086 = vld [vmem:[%s1085] sm:$0x1]
      %v1087 = vrot.slane %v1034, 4
      %v1088 = vrot.slane %v1035, 4
      %vm1089 = vcmp.lt.s32.totalorder %v227, 4
      %v1090 = vsel %vm1089, %v1087, %v1088
      %v1091 = vsel %vm1089, %v1088, %v1087
      %v1092 = vmul.f32 %v1091, %v239
      %v1093 = vmul.f32 %v1090, %v240
      %v1094 = vmul.f32 %v1090, %v299
      %v1095 = vmul.f32 %v1091, %v300
      %v1096 = vpack.c.bf16 %v1093, %v1092
      %v1097 = vpack.c.bf16 %v1035, %v1034
      %v1098 = vpack.c.bf16 %v1095, %v1094
      %v1100 = vperm.slane %v1086, 0
      %v1150 = vunpack.c.l.b16 %v1037
      %v1151 = vunpack.c.l.b16 %v1038
      %v1152 = vunpack.c.l.b16 %v1039
      %v1153 = vunpack.c.l.b16 %v1040
      %v1154 = vunpack.c.l.b16 %v1041
      %v1155 = vunpack.c.l.b16 %v1042
      %v1156 = vunpack.c.l.b16 %v1043
      %v1157 = vunpack.c.l.b16 %v1044
      %v1158 = vunpack.c.l.b16 %v1045
      %v1159 = vunpack.c.l.b16 %v1046
      %v1160 = vunpack.c.l.b16 %v1047
      %v1161 = vunpack.c.l.b16 %v1048
      %v1162 = vunpack.c.l.b16 %v1049
      %v1163 = vunpack.c.l.b16 %v1050
      %v1164 = vunpack.c.l.b16 %v1051
      %v1165 = vunpack.c.l.b16 %v1052
      %v1166 = vunpack.c.l.b16 %v1053
      %v1167 = vunpack.c.l.b16 %v1054
      %v1168 = vunpack.c.l.b16 %v1055
      %v1169 = vunpack.c.l.b16 %v1056
      %v1170 = vunpack.c.l.b16 %v1057
      %v1171 = vunpack.c.l.b16 %v1058
      %v1172 = vunpack.c.l.b16 %v1059
      %v1173 = vunpack.c.l.b16 %v1060
      %v1174 = vunpack.c.l.b16 %v1061
      %v1175 = vunpack.c.l.b16 %v1062
      %v1176 = vunpack.c.l.b16 %v1063
      %v1177 = vunpack.c.l.b16 %v1064
      %v1178 = vunpack.c.l.b16 %v1065
      %v1179 = vunpack.c.l.b16 %v1066
      %v1180 = vunpack.c.l.b16 %v1067
      %v1181 = vunpack.c.l.b16 %v1068
      %v1182 = vunpack.c.l.b16 %v1069
      %v1183 = vunpack.c.l.b16 %v1070
      %v1184 = vunpack.c.l.b16 %v1071
      %v1185 = vunpack.c.l.b16 %v1072
      %v1186 = vunpack.c.l.b16 %v1073
      %v1187 = vunpack.c.l.b16 %v1074
      %v1188 = vunpack.c.l.b16 %v1075
      %v1189 = vunpack.c.l.b16 %v1076
      %v1190 = vunpack.c.l.b16 %v1077
      %v1191 = vunpack.c.l.b16 %v1078
      %v1192 = vunpack.c.l.b16 %v1079
      %v1193 = vunpack.c.l.b16 %v1080
      %v1194 = vunpack.c.l.b16 %v1081
      %v1195 = vunpack.c.l.b16 %v1082
      %v1196 = vunpack.c.l.b16 %v1083
      %v1197 = vunpack.c.l.b16 %v1084
      %v1198 = vpack.c.b16 %v1151, %v1150
      %v1199 = vpack.c.b16 %v1153, %v1152
      %v1200 = vpack.c.b16 %v1155, %v1154
      %v1201 = vpack.c.b16 %v1157, %v1156
      %v1202 = vpack.c.b16 %v1159, %v1158
      %v1203 = vpack.c.b16 %v1161, %v1160
      %v1204 = vpack.c.b16 %v1163, %v1162
      %v1205 = vpack.c.b16 %v1165, %v1164
      %v1206 = vpack.c.b16 %v1167, %v1166
      %v1207 = vpack.c.b16 %v1169, %v1168
      %v1208 = vpack.c.b16 %v1171, %v1170
      %v1209 = vpack.c.b16 %v1173, %v1172
      %v1210 = vpack.c.b16 %v1175, %v1174
      %v1211 = vpack.c.b16 %v1177, %v1176
      %v1212 = vpack.c.b16 %v1179, %v1178
      %v1213 = vpack.c.b16 %v1181, %v1180
      %v1214 = vpack.c.b16 %v1183, %v1182
      %v1215 = vpack.c.b16 %v1185, %v1184
      %v1216 = vpack.c.b16 %v1187, %v1186
      %v1217 = vpack.c.b16 %v1189, %v1188
      %v1218 = vpack.c.b16 %v1191, %v1190
      %v1219 = vpack.c.b16 %v1193, %v1192
      %v1220 = vpack.c.b16 %v1195, %v1194
      %v1221 = vpack.c.b16 %v1197, %v1196
      %1246 = vmatpush.bf16.msra.mxu0 %v1205
      %1247 = vmatpush.bf16.msra.mxu0 %v1204
      %1248 = vmatpush.bf16.msra.mxu0 %v1203
      %1249 = vmatpush.bf16.msra.mxu0 %v1202
      %1250 = vmatpush.bf16.msra.mxu0 %v1201
      %1251 = vmatpush.bf16.msra.mxu0 %v1200
      %1252 = vmatpush.bf16.msra.mxu0 %v1199
      %1253 = vmatpush.bf16.msra.mxu0 %v1198
      %1254 = vmatmul.bf16.gmra.mxu0 %v1096
      %v1255 = vpop.f32.mrf.mxu0
      %v1256 = vadd.f32 %v1100, %v1255
      %v1257 = vpop.f32.mrf.mxu0
      %v1258 = vadd.f32 %v1100, %v1257
      %1259 = vdwg.mxu0
      %1260 = vmatpush.bf16.msra.mxu0 %v1213
      %1261 = vmatpush.bf16.msra.mxu0 %v1212
      %1262 = vmatpush.bf16.msra.mxu0 %v1211
      %1263 = vmatpush.bf16.msra.mxu0 %v1210
      %1264 = vmatpush.bf16.msra.mxu0 %v1209
      %1265 = vmatpush.bf16.msra.mxu0 %v1208
      %1266 = vmatpush.bf16.msra.mxu0 %v1207
      %1267 = vmatpush.bf16.msra.mxu0 %v1206
      %1268 = vmatmul.bf16.gmra.mxu0 %v1097
      %v1269 = vpop.f32.mrf.mxu0
      %v1270 = vadd.f32 %v1256, %v1269
      %v1271 = vpop.f32.mrf.mxu0
      %v1272 = vadd.f32 %v1258, %v1271
      %1273 = vdwg.mxu0
      %1274 = vmatpush.bf16.msra.mxu0 %v1221
      %1275 = vmatpush.bf16.msra.mxu0 %v1220
      %1276 = vmatpush.bf16.msra.mxu0 %v1219
      %1277 = vmatpush.bf16.msra.mxu0 %v1218
      %1278 = vmatpush.bf16.msra.mxu0 %v1217
      %1279 = vmatpush.bf16.msra.mxu0 %v1216
      %1280 = vmatpush.bf16.msra.mxu0 %v1215
      %1281 = vmatpush.bf16.msra.mxu0 %v1214
      %1282 = vmatmul.bf16.gmra.mxu0 %v1098
      %v1283 = vpop.f32.mrf.mxu0
      %v1284 = vadd.f32 %v1270, %v1283
      %v1285 = vpop.f32.mrf.mxu0
      %v1286 = vadd.f32 %v1272, %v1285
      %1287 = vdwg.mxu0
      %vm1288 = vcmp.gt.f32.partialorder %v1284, 0.0
      %vm1289 = vcmp.gt.f32.partialorder %v1286, 0.0
      %v1290 = vmin.f32 %v1284, 0.0
      %v1291 = vmin.f32 %v1286, 0.0
      %v1292 = vmul.f32 %v1290, 1.442695
      %v1293 = vpow.pop %v1292
      %v1294 = vmul.f32 %v1291, 1.442695
      %v1295 = vpow.pop %v1294
      %v1296 = vsub.f32 %v1293, 1.0
      %v1297 = vsub.f32 %v1295, 1.0
      %v1298 = vsel %vm1288, %v1284, %v1296
      %v1299 = vsel %vm1289, %v1286, %v1297
      %v1300 = vadd.f32 %v1298, %v998
      %v1301 = vadd.f32 %v1299, %v999
      %v1302 = vadd.f32 %v1300, %v1301
      %v1303 = vrot.slane %v1302, 4
      %v1304 = vadd.f32 %v1302, %v1303
      %v1305 = vrot.slane %v1304, 2
      %v1306 = vadd.f32 %v1304, %v1305
      %v1307 = vrot.slane %v1306, 1
      %v1308 = vadd.f32 %v1306, %v1307
      %v1309 = vmul.f32 %v1308, 0.0625
      %v1310 = vmul.f32 %v1300, %v1300
      %v1311 = vmul.f32 %v1301, %v1301
      %v1312 = vadd.f32 %v1310, %v1311
      %v1313 = vrot.slane %v1312, 4
      %v1314 = vadd.f32 %v1312, %v1313
      %v1315 = vrot.slane %v1314, 2
      %v1316 = vadd.f32 %v1314, %v1315
      %v1317 = vrot.slane %v1316, 1
      %v1318 = vadd.f32 %v1316, %v1317
      %v1319 = vmul.f32 %v1318, 0.0625
      %v1320 = vmul.f32 %v1309, %v1309
      %v1321 = vsub.f32 %v1319, %v1320
      %v1322 = vmax.f32 %v1321, 0.0
      %v1323 = vadd.f32 %v1322, 1e-05
      %v1324 = vrsqrt.pop %v1323
      %v1325 = vmul.f32 %v1324, %v1323
      %v1326 = vmul.f32 %v1325, %v1324
      %v1327 = vmul.f32 0.5, %v1326
      %v1328 = vsub.f32 1.5, %v1327
      %v1329 = vmul.f32 %v1324, %v1328
      %vm1330 = vweird.f32 %v1323
      %vm1331 = vweird.f32 %v1324
      %vm1332 = vmor %vm1330, %vm1331
      %v1333 = vsel %vm1332, %v1324, %v1329
      %v1334 = vsub.f32 %v1300, %v1309
      %v1335 = vsub.f32 %v1301, %v1309
      %v1336 = vmul.f32 %v1334, %v1333
      %v1337 = vmul.f32 %v1335, %v1333
      %s1338 = scalar_lea.vmem %s3, 576
      %v1339 = vld [vmem:[%s1338] sm:$0xf]
      %v1340 = vld [vmem:[%s1338 + $0x4] sm:$0xf]
      %v1341 = vld [vmem:[%s1338 + $0x8] sm:$0xf]
      %v1342 = vld [vmem:[%s1338 + $0xc] sm:$0xf]
      %v1343 = vld [vmem:[%s1338 + $0x10] sm:$0xf]
      %v1344 = vld [vmem:[%s1338 + $0x14] sm:$0xf]
      %v1345 = vld [vmem:[%s1338 + $0x18] sm:$0xf]
      %v1346 = vld [vmem:[%s1338 + $0x1c] sm:$0xf]
      %v1347 = vld [vmem:[%s1338 + $0x20] sm:$0xf]
      %v1348 = vld [vmem:[%s1338 + $0x24] sm:$0xf]
      %v1349 = vld [vmem:[%s1338 + $0x28] sm:$0xf]
      %v1350 = vld [vmem:[%s1338 + $0x2c] sm:$0xf]
      %v1351 = vld [vmem:[%s1338 + $0x30] sm:$0xf]
      %v1352 = vld [vmem:[%s1338 + $0x34] sm:$0xf]
      %v1353 = vld [vmem:[%s1338 + $0x38] sm:$0xf]
      %v1354 = vld [vmem:[%s1338 + $0x3c] sm:$0xf]
      %v1355 = vld [vmem:[%s1338 + $0x40] sm:$0xf]
      %v1356 = vld [vmem:[%s1338 + $0x44] sm:$0xf]
      %v1357 = vld [vmem:[%s1338 + $0x48] sm:$0xf]
      %v1358 = vld [vmem:[%s1338 + $0x4c] sm:$0xf]
      %v1359 = vld [vmem:[%s1338 + $0x50] sm:$0xf]
      %v1360 = vld [vmem:[%s1338 + $0x54] sm:$0xf]
      %v1361 = vld [vmem:[%s1338 + $0x58] sm:$0xf]
      %v1362 = vld [vmem:[%s1338 + $0x5c] sm:$0xf]
      %v1363 = vld [vmem:[%s1338 + $0x60] sm:$0xf]
      %v1364 = vld [vmem:[%s1338 + $0x64] sm:$0xf]
      %v1365 = vld [vmem:[%s1338 + $0x68] sm:$0xf]
      %v1366 = vld [vmem:[%s1338 + $0x6c] sm:$0xf]
      %v1367 = vld [vmem:[%s1338 + $0x70] sm:$0xf]
      %v1368 = vld [vmem:[%s1338 + $0x74] sm:$0xf]
      %v1369 = vld [vmem:[%s1338 + $0x78] sm:$0xf]
      %v1370 = vld [vmem:[%s1338 + $0x7c] sm:$0xf]
      %v1371 = vld [vmem:[%s1338 + $0x80] sm:$0xf]
      %v1372 = vld [vmem:[%s1338 + $0x84] sm:$0xf]
      %v1373 = vld [vmem:[%s1338 + $0x88] sm:$0xf]
      %v1374 = vld [vmem:[%s1338 + $0x8c] sm:$0xf]
      %v1375 = vld [vmem:[%s1338 + $0x90] sm:$0xf]
      %v1376 = vld [vmem:[%s1338 + $0x94] sm:$0xf]
      %v1377 = vld [vmem:[%s1338 + $0x98] sm:$0xf]
      %v1378 = vld [vmem:[%s1338 + $0x9c] sm:$0xf]
      %v1379 = vld [vmem:[%s1338 + $0xa0] sm:$0xf]
      %v1380 = vld [vmem:[%s1338 + $0xa4] sm:$0xf]
      %v1381 = vld [vmem:[%s1338 + $0xa8] sm:$0xf]
      %v1382 = vld [vmem:[%s1338 + $0xac] sm:$0xf]
      %v1383 = vld [vmem:[%s1338 + $0xb0] sm:$0xf]
      %v1384 = vld [vmem:[%s1338 + $0xb4] sm:$0xf]
      %v1385 = vld [vmem:[%s1338 + $0xb8] sm:$0xf]
      %v1386 = vld [vmem:[%s1338 + $0xbc] sm:$0xf]
      %s1387 = scalar_lea.vmem %s4, 3
      %v1388 = vld [vmem:[%s1387] sm:$0x1]
      %v1389 = vrot.slane %v1336, 7
      %v1390 = vrot.slane %v1337, 7
      %v1391 = vsel %vm309, %v1389, %v1390
      %v1392 = vsel %vm309, %v1390, %v1389
      %v1393 = vmul.f32 %v1392, %v263
      %v1394 = vmul.f32 %v1391, %v264
      %v1395 = vrot.slane %v1336, 1
      %v1396 = vrot.slane %v1337, 1
      %v1397 = vsel %vm316, %v1395, %v1396
      %v1398 = vsel %vm316, %v1396, %v1395
      %v1399 = vmul.f32 %v1397, %v275
      %v1400 = vmul.f32 %v1398, %v276
      %v1401 = vpack.c.bf16 %v1394, %v1393
      %v1402 = vpack.c.bf16 %v1337, %v1336
      %v1403 = vpack.c.bf16 %v1400, %v1399
      %v1405 = vperm.slane %v1388, 0
      %v1455 = vunpack.c.l.b16 %v1339
      %v1456 = vunpack.c.l.b16 %v1340
      %v1457 = vunpack.c.l.b16 %v1341
      %v1458 = vunpack.c.l.b16 %v1342
      %v1459 = vunpack.c.l.b16 %v1343
      %v1460 = vunpack.c.l.b16 %v1344
      %v1461 = vunpack.c.l.b16 %v1345
      %v1462 = vunpack.c.l.b16 %v1346
      %v1463 = vunpack.c.l.b16 %v1347
      %v1464 = vunpack.c.l.b16 %v1348
      %v1465 = vunpack.c.l.b16 %v1349
      %v1466 = vunpack.c.l.b16 %v1350
      %v1467 = vunpack.c.l.b16 %v1351
      %v1468 = vunpack.c.l.b16 %v1352
      %v1469 = vunpack.c.l.b16 %v1353
      %v1470 = vunpack.c.l.b16 %v1354
      %v1471 = vunpack.c.l.b16 %v1355
      %v1472 = vunpack.c.l.b16 %v1356
      %v1473 = vunpack.c.l.b16 %v1357
      %v1474 = vunpack.c.l.b16 %v1358
      %v1475 = vunpack.c.l.b16 %v1359
      %v1476 = vunpack.c.l.b16 %v1360
      %v1477 = vunpack.c.l.b16 %v1361
      %v1478 = vunpack.c.l.b16 %v1362
      %v1479 = vunpack.c.l.b16 %v1363
      %v1480 = vunpack.c.l.b16 %v1364
      %v1481 = vunpack.c.l.b16 %v1365
      %v1482 = vunpack.c.l.b16 %v1366
      %v1483 = vunpack.c.l.b16 %v1367
      %v1484 = vunpack.c.l.b16 %v1368
      %v1485 = vunpack.c.l.b16 %v1369
      %v1486 = vunpack.c.l.b16 %v1370
      %v1487 = vunpack.c.l.b16 %v1371
      %v1488 = vunpack.c.l.b16 %v1372
      %v1489 = vunpack.c.l.b16 %v1373
      %v1490 = vunpack.c.l.b16 %v1374
      %v1491 = vunpack.c.l.b16 %v1375
      %v1492 = vunpack.c.l.b16 %v1376
      %v1493 = vunpack.c.l.b16 %v1377
      %v1494 = vunpack.c.l.b16 %v1378
      %v1495 = vunpack.c.l.b16 %v1379
      %v1496 = vunpack.c.l.b16 %v1380
      %v1497 = vunpack.c.l.b16 %v1381
      %v1498 = vunpack.c.l.b16 %v1382
      %v1499 = vunpack.c.l.b16 %v1383
      %v1500 = vunpack.c.l.b16 %v1384
      %v1501 = vunpack.c.l.b16 %v1385
      %v1502 = vunpack.c.l.b16 %v1386
      %v1503 = vpack.c.b16 %v1456, %v1455
      %v1504 = vpack.c.b16 %v1458, %v1457
      %v1505 = vpack.c.b16 %v1460, %v1459
      %v1506 = vpack.c.b16 %v1462, %v1461
      %v1507 = vpack.c.b16 %v1464, %v1463
      %v1508 = vpack.c.b16 %v1466, %v1465
      %v1509 = vpack.c.b16 %v1468, %v1467
      %v1510 = vpack.c.b16 %v1470, %v1469
      %v1511 = vpack.c.b16 %v1472, %v1471
      %v1512 = vpack.c.b16 %v1474, %v1473
      %v1513 = vpack.c.b16 %v1476, %v1475
      %v1514 = vpack.c.b16 %v1478, %v1477
      %v1515 = vpack.c.b16 %v1480, %v1479
      %v1516 = vpack.c.b16 %v1482, %v1481
      %v1517 = vpack.c.b16 %v1484, %v1483
      %v1518 = vpack.c.b16 %v1486, %v1485
      %v1519 = vpack.c.b16 %v1488, %v1487
      %v1520 = vpack.c.b16 %v1490, %v1489
      %v1521 = vpack.c.b16 %v1492, %v1491
      %v1522 = vpack.c.b16 %v1494, %v1493
      %v1523 = vpack.c.b16 %v1496, %v1495
      %v1524 = vpack.c.b16 %v1498, %v1497
      %v1525 = vpack.c.b16 %v1500, %v1499
      %v1526 = vpack.c.b16 %v1502, %v1501
      %1551 = vmatpush.bf16.msra.mxu0 %v1510
      %1552 = vmatpush.bf16.msra.mxu0 %v1509
      %1553 = vmatpush.bf16.msra.mxu0 %v1508
      %1554 = vmatpush.bf16.msra.mxu0 %v1507
      %1555 = vmatpush.bf16.msra.mxu0 %v1506
      %1556 = vmatpush.bf16.msra.mxu0 %v1505
      %1557 = vmatpush.bf16.msra.mxu0 %v1504
      %1558 = vmatpush.bf16.msra.mxu0 %v1503
      %1559 = vmatmul.bf16.gmra.mxu0 %v1401
      %v1560 = vpop.f32.mrf.mxu0
      %v1561 = vadd.f32 %v1405, %v1560
      %v1562 = vpop.f32.mrf.mxu0
      %v1563 = vadd.f32 %v1405, %v1562
      %1564 = vdwg.mxu0
      %1565 = vmatpush.bf16.msra.mxu0 %v1518
      %1566 = vmatpush.bf16.msra.mxu0 %v1517
      %1567 = vmatpush.bf16.msra.mxu0 %v1516
      %1568 = vmatpush.bf16.msra.mxu0 %v1515
      %1569 = vmatpush.bf16.msra.mxu0 %v1514
      %1570 = vmatpush.bf16.msra.mxu0 %v1513
      %1571 = vmatpush.bf16.msra.mxu0 %v1512
      %1572 = vmatpush.bf16.msra.mxu0 %v1511
      %1573 = vmatmul.bf16.gmra.mxu0 %v1402
      %v1574 = vpop.f32.mrf.mxu0
      %v1575 = vadd.f32 %v1561, %v1574
      %v1576 = vpop.f32.mrf.mxu0
      %v1577 = vadd.f32 %v1563, %v1576
      %1578 = vdwg.mxu0
      %1579 = vmatpush.bf16.msra.mxu0 %v1526
      %1580 = vmatpush.bf16.msra.mxu0 %v1525
      %1581 = vmatpush.bf16.msra.mxu0 %v1524
      %1582 = vmatpush.bf16.msra.mxu0 %v1523
      %1583 = vmatpush.bf16.msra.mxu0 %v1522
      %1584 = vmatpush.bf16.msra.mxu0 %v1521
      %1585 = vmatpush.bf16.msra.mxu0 %v1520
      %1586 = vmatpush.bf16.msra.mxu0 %v1519
      %1587 = vmatmul.bf16.gmra.mxu0 %v1403
      %v1588 = vpop.f32.mrf.mxu0
      %v1589 = vadd.f32 %v1575, %v1588
      %v1590 = vpop.f32.mrf.mxu0
      %v1591 = vadd.f32 %v1577, %v1590
      %1592 = vdwg.mxu0
      %vm1593 = vcmp.gt.f32.partialorder %v1589, 0.0
      %vm1594 = vcmp.gt.f32.partialorder %v1591, 0.0
      %v1595 = vmin.f32 %v1589, 0.0
      %v1596 = vmin.f32 %v1591, 0.0
      %v1597 = vmul.f32 %v1595, 1.442695
      %v1598 = vpow.pop %v1597
      %v1599 = vmul.f32 %v1596, 1.442695
      %v1600 = vpow.pop %v1599
      %v1601 = vsub.f32 %v1598, 1.0
      %v1602 = vsub.f32 %v1600, 1.0
      %v1603 = vsel %vm1593, %v1589, %v1601
      %v1604 = vsel %vm1594, %v1591, %v1602
      %v1605 = vadd.f32 %v1603, %v1300
      %v1606 = vadd.f32 %v1604, %v1301
      %1607 = vst [vmem:[%s224] sm:$0xff] %v1605
      %1608 = vst [vmem:[%s224 + $0x8] sm:$0xff] %v1606
      %p1609 = scmp.lt.s32.totalorder %s16, 1
      %s1610 = scalar_select %p1609, %s16, 1
      %s1611 = smul.addr %s1610, 2
      %s1612 = smul.addr %s1611, 8
      %s1613 = scalar_lea.vmem %s5, %s1612
      // Predicated region
      $region41: #{local_features.1} parent=39 // pred_check
        %p1614 = pneg %p144
      $region42: #{local_features.1} parent=39 // pred_check_branch
        %1616 = sbr.rel (%p1614) target = $region44
      $region43: #{local_features.1} parent=39 // pred_region
        _
      $region44: #{local_features.1} parent=39 // pred_fallthru
        _
    $region40: #{local_features.1} parent=5 // pred_fallthru
      _
    %p1617 = scmp.le.s32.totalorder 2, %s11
    // Predicated region
    $region45: #{local_features.1} parent=5 // pred_check
      %p1618 = pneg %p1617
    $region46: #{local_features.1} parent=5 // pred_check_branch
      %1620 = sbr.rel (%p1618) target = $region48
    $region47: #{local_features.1} parent=5 // pred_region
      %s1621 = ssub.s32 %s11, 2
      // Predicated region
      $region49: #{local_features.1} parent=47 // pred_check
        %p1622 = pneg %p150
      $region50: #{local_features.1} parent=47 // pred_check_branch
        %1624 = sbr.rel (%p1622) target = $region52
      $region51: #{local_features.1} parent=47 // pred_region
        %p1625 = scmp.lt.s32.totalorder %s17, 1
        %s1626 = scalar_select %p1625, %s17, 1
        %s1627 = smul.addr %s1626, 2
        %s1628 = smul.addr %s1627, 8
        %s1629 = scalar_lea.vmem %s5, %s1628
      $region52: #{local_features.1} parent=47 // pred_fallthru
        _
    $region48: #{local_features.1} parent=5 // pred_fallthru
      _
  $region6: #{local_features.1} parent=0 // loop_footer
    %s15 = sadd.s32 1, %s11
  $region7: #{local_features.1} parent=0 // loop_footer_branch
    %10 = sbr.rel target = $region3
  $region8: #{local_features.1} parent=0 // loop_exit
    _

</llo_original>
